<compile_context>
chip_gen: v5e
topology: v5e:2x2
jax: 0.10.0
libtpu: 0.0.40
codegen_flags: <defaults>
</compile_context>

<pallas_src>
import functools

import jax
import jax.numpy as jnp
from jax.experimental import pallas as pl
from jax.experimental.pallas import tpu as pltpu


def _resblock_kernel(xp_ref, w_ref, vec_ref, o_ref, *, N, C, H, W, K, eps):
    P = K // 2
    LANES = N * C * W                 # 128 for the test shapes
    inv_nchan = 1.0 / (N * H * W)     # BN divisor (biased batch variance)
    f32 = jnp.float32

    # ---- hoisted constants (JAX does not CSE broadcasts) --------------------
    # Per-channel lane indicators arrive as 0/1 float rows 6..6+C of vec_ref.
    cmask_row = [vec_ref[6 + c:7 + c, :] > 0.5 for c in range(C)]      # (1, LANES)
    cmask_full = [jnp.broadcast_to(m, (H, LANES)) for m in cmask_row]  # ~2C vregs
    row = jax.lax.broadcasted_iota(jnp.int32, (H, 1), 0)

    b1_row, b2_row = vec_ref[0:1, :], vec_ref[1:2, :]
    g1_row, be1_row = vec_ref[2:3, :], vec_ref[3:4, :]
    g2_row, be2_row = vec_ref[4:5, :], vec_ref[5:6, :]

    def replicate_channel(val, ci):
        # rep[h, (n, c, w)] = val[h, (n, ci, w)]: broadcast input channel `ci`
        # to every lane group c (C-1 XLU rolls + C-1 VALU selects).
        parts = []
        for ct in range(C):
            s = ((ct - ci) * W) % LANES
            parts.append(val if s == 0 else pltpu.roll(val, s, 1))
        rep = parts[C - 1]
        for ct in range(C - 2, -1, -1):
            rep = jnp.where(cmask_full[ct], parts[ct], rep)
        return rep

    def shift_rows(val, dy):
        # out[h, :] = val[h + dy - P, :], zero outside [0, H)  (H halo).
        off = dy - P
        if off == 0:
            return val
        rolled = pltpu.roll(val, (-off) % H, 0)
        if off < 0:
            return jnp.where(row < -off, 0.0, rolled)
        return jnp.where(row >= H - off, 0.0, rolled)

    def shift_lanes(val, dx):
        # out[h, (n, c, w)] = val[h, (n, c, w + dx - P)]; lanes that cross the
        # w-group boundary carry garbage that is zeroed by the W-halo mask
        # folded into the packed weight rows (no masks in the inner loop).
        off = dx - P
        if off == 0:
            return val
        return pltpu.roll(val, (-off) % LANES, 1)

    def conv(src_for_ci, w_base, bias_row):
        # Direct conv on the VPU: one (H, LANES) FMA per tap produces every
        # output channel and both batch items at once.  C independent partial
        # accumulators (one per input channel) keep the add chain short; they
        # are tree-summed afterwards so rolls / weight loads / muls co-issue.
        # TODO(synk): the (1, LANES) weight rows could use a stride-0
        #   sublane-broadcast read once that lowering is confirmed on the
        #   target jax version.
        partials = []
        for ci in range(C):
            rep = src_for_ci(ci)
            acc = None
            for dy in range(K):
                shifted = shift_rows(rep, dy)
                for dx in range(K):
                    t = w_base + (ci * K + dy) * K + dx
                    term = shift_lanes(shifted, dx) * w_ref[t:t + 1, :]
                    acc = term if acc is None else acc + term
            partials.append(acc)
        while len(partials) > 1:           # tree-sum the independent chains
            nxt = [partials[i] + partials[i + 1]
                   for i in range(0, len(partials) - 1, 2)]
            if len(partials) % 2:
                nxt.append(partials[-1])
            partials = nxt
        return partials[0] + bias_row

    def batchnorm(acc, g_row, be_row, relu):
        # Per-channel batch stats in packed lane space, single pass
        # (var = E[x^2] - mean^2) so all 2C masked lane reductions are
        # independent and pipeline; rsqrt runs once on a (1, LANES) vector.
        col_sum = jnp.sum(acc, axis=0, keepdims=True)          # (1, LANES)
        col_sq = jnp.sum(acc * acc, axis=0, keepdims=True)     # (1, LANES)
        mean_vec = jnp.zeros((1, LANES), f32)
        msq_vec = jnp.zeros((1, LANES), f32)
        for c in range(C):
            m_c = jnp.sum(jnp.where(cmask_row[c], col_sum, 0.0),
                          axis=1, keepdims=True) * inv_nchan   # (1, 1)
            q_c = jnp.sum(jnp.where(cmask_row[c], col_sq, 0.0),
                          axis=1, keepdims=True) * inv_nchan
            mean_vec = jnp.where(cmask_row[c], m_c, mean_vec)
            msq_vec = jnp.where(cmask_row[c], q_c, msq_vec)
        var_vec = msq_vec - mean_vec * mean_vec
        scale = jax.lax.rsqrt(var_vec + eps) * g_row           # EUP
        y = (acc - mean_vec) * scale + be_row
        return jnp.maximum(y, 0.0) if relu else y

    xp = xp_ref[...].astype(f32)

    # conv1 -> bn1+relu (stats hoisted, applied once) -> conv2 -> bn2
    acc1 = conv(lambda ci: replicate_channel(xp, ci), 0, b1_row)
    y1 = batchnorm(acc1, g1_row, be1_row, relu=True)
    acc2 = conv(lambda ci: replicate_channel(y1, ci), C * K * K, b2_row)
    y2 = batchnorm(acc2, g2_row, be2_row, relu=False)

    # residual add + relu, one lane-dense unmasked (H, LANES) store.
    o_ref[...] = jnp.maximum(xp + y2, 0.0).astype(o_ref.dtype)


def _pack_channel_vec(v, N, C, W):
    # (C,) -> (1, N*C*W): value v[c] at every lane of channel group c.
    return jnp.broadcast_to(v[None, :, None], (N, C, W)).reshape(1, N * C * W)


def _pack_conv_weight(w, N, W):
    # (C_out, C_in, K, K) -> (C_in*K*K, N*C_out*W) per-lane weight rows, with
    # the dx (width) halo mask folded in.  Init-time layout plumbing.
    C_out, C_in, K, _ = w.shape
    P = K // 2
    lanes = N * C_out * W
    taps = C_in * K * K
    wt = jnp.transpose(w, (1, 2, 3, 0)).reshape(taps, C_out)   # row t = (ci, dy, dx)
    rows = jnp.broadcast_to(wt[:, None, :, None],
                            (taps, N, C_out, W)).reshape(taps, lanes)
    dx = jnp.arange(K)
    w_pos = jnp.arange(W)
    valid = ((w_pos[None, :] + dx[:, None] - P >= 0)
             & (w_pos[None, :] + dx[:, None] - P < W))         # (K, W)
    row_dx = jnp.arange(taps) % K
    mask = jnp.tile(valid[row_dx].astype(w.dtype), (1, N * C_out))
    return rows * mask


@functools.partial(jax.jit, static_argnames="kernel_size")
def resblock_forward(x, params, kernel_size):
    N, C, H, W = x.shape
    K = kernel_size
    assert K % 2 == 1, f"kernel size must be odd, got {K}"
    lanes = N * C * W

    # Layout plumbing: lane-pack activations as (H, N*C*W); stack both conv
    # weight slabs and all per-channel vectors (+ channel indicator rows) so
    # the kernel has only 3 input DMAs.
    xp = jnp.transpose(x, (2, 0, 1, 3)).reshape(H, lanes).astype(jnp.float32)
    w_all = jnp.concatenate([_pack_conv_weight(params["w1"], N, W),
                             _pack_conv_weight(params["w2"], N, W)], axis=0)
    lane_chan = (jnp.arange(lanes) // W) % C
    chan_ind = (lane_chan[None, :] == jnp.arange(C)[:, None]).astype(jnp.float32)
    vecs = jnp.concatenate(
        [_pack_channel_vec(params[k], N, C, W)
         for k in ("b1", "b2", "g1", "be1", "g2", "be2")] + [chan_ind], axis=0)

    vmem = pl.BlockSpec(memory_space=pltpu.MemorySpace.VMEM)
    kernel = functools.partial(_resblock_kernel,
                               N=N, C=C, H=H, W=W, K=K, eps=1e-5)

    out_p = pl.pallas_call(
        kernel,
        out_shape=jax.ShapeDtypeStruct((H, lanes), jnp.float32),
        in_specs=[vmem, vmem, vmem],
        out_specs=vmem,
    )(xp, w_all, vecs)

    return jnp.transpose(out_p.reshape(H, N, C, W), (1, 2, 0, 3)).astype(x.dtype)


def resblock_reference(x, params, kernel_size):
    # Pure-JAX reference mirroring the PyTorch forward in train mode.
    eps = 1e-5

    def conv(z, w, b):
        y = jax.lax.conv_general_dilated(
            z, w, window_strides=(1, 1), padding="SAME",
            dimension_numbers=("NCHW", "OIHW", "NCHW"))
        return y + b[None, :, None, None]

    def bn(y, g, be):
        mean = jnp.mean(y, axis=(0, 2, 3), keepdims=True)
        var = jnp.mean((y - mean) ** 2, axis=(0, 2, 3), keepdims=True)
        return ((y - mean) * jax.lax.rsqrt(var + eps)
                * g[None, :, None, None] + be[None, :, None, None])

    y = jax.nn.relu(bn(conv(x, params["w1"], params["b1"]),
                       params["g1"], params["be1"]))
    y = bn(conv(y, params["w2"], params["b2"]), params["g2"], params["be2"])
    return jax.nn.relu(x + y)


if __name__ == "__main__":
    N, C, H, W, K = 2, 4, 16, 16, 3  # num_filters=4, kernel_size=3
    key = jax.random.PRNGKey(0)
    keys = jax.random.split(key, 9)
    x = jax.random.normal(keys[0], (N, C, H, W), jnp.float32)
    params = {
        "w1": 0.1 * jax.random.normal(keys[1], (C, C, K, K), jnp.float32),
        "b1": 0.1 * jax.random.normal(keys[2], (C,), jnp.float32),
        "g1": 1.0 + 0.1 * jax.random.normal(keys[3], (C,), jnp.float32),
        "be1": 0.1 * jax.random.normal(keys[4], (C,), jnp.float32),
        "w2": 0.1 * jax.random.normal(keys[5], (C, C, K, K), jnp.float32),
        "b2": 0.1 * jax.random.normal(keys[6], (C,), jnp.float32),
        "g2": 1.0 + 0.1 * jax.random.normal(keys[7], (C,), jnp.float32),
        "be2": 0.1 * jax.random.normal(keys[8], (C,), jnp.float32),
    }

    out = resblock_forward(x, params, kernel_size=K)
    out = jax.block_until_ready(out)

    ref = resblock_reference(x, params, K)
    assert out.shape == (N, C, H, W)
    max_err = float(jnp.max(jnp.abs(out - ref)))
    assert jnp.allclose(out, ref, atol=1e-4, rtol=1e-4), f"max abs err = {max_err}"
    print("KERNEL_OK")
</pallas_src>

<mosaic_0001>
module attributes {stable_mosaic.version = 11 : i64} {
  func.func @_resblock_kernel(%arg0: memref<16x128xf32, #tpu.memory_space<vmem>>, %arg1: memref<72x128xf32, #tpu.memory_space<vmem>>, %arg2: memref<10x128xf32, #tpu.memory_space<vmem>>, %arg3: memref<16x128xf32, #tpu.memory_space<vmem>>) attributes {dimension_semantics = [], scalar_prefetch = 0 : i64, scratch_operands = 0 : i64, tpu.core_type = #tpu.core_type<tc>} {
    %c6 = arith.constant 6 : index
    %c0 = arith.constant 0 : index
    %0 = vector.load %arg2[%c6, %c0] : memref<10x128xf32, #tpu.memory_space<vmem>>, vector<1x128xf32>
    %cst = arith.constant 5.000000e-01 : f32
    %1 = vector.broadcast %cst : f32 to vector<1x128xf32>
    %2 = arith.cmpf ogt, %0, %1 : vector<1x128xf32>
    %c7 = arith.constant 7 : index
    %c0_0 = arith.constant 0 : index
    %3 = vector.load %arg2[%c7, %c0_0] : memref<10x128xf32, #tpu.memory_space<vmem>>, vector<1x128xf32>
    %cst_1 = arith.constant 5.000000e-01 : f32
    %4 = vector.broadcast %cst_1 : f32 to vector<1x128xf32>
    %5 = arith.cmpf ogt, %3, %4 : vector<1x128xf32>
    %c8 = arith.constant 8 : index
    %c0_2 = arith.constant 0 : index
    %6 = vector.load %arg2[%c8, %c0_2] : memref<10x128xf32, #tpu.memory_space<vmem>>, vector<1x128xf32>
    %cst_3 = arith.constant 5.000000e-01 : f32
    %7 = vector.broadcast %cst_3 : f32 to vector<1x128xf32>
    %8 = arith.cmpf ogt, %6, %7 : vector<1x128xf32>
    %c9 = arith.constant 9 : index
    %c0_4 = arith.constant 0 : index
    %9 = vector.load %arg2[%c9, %c0_4] : memref<10x128xf32, #tpu.memory_space<vmem>>, vector<1x128xf32>
    %cst_5 = arith.constant 5.000000e-01 : f32
    %10 = vector.broadcast %cst_5 : f32 to vector<1x128xf32>
    %11 = arith.cmpf ogt, %9, %10 : vector<1x128xf32>
    %12 = vector.shape_cast %2 : vector<1x128xi1> to vector<1x128xi1>
    %13 = vector.broadcast %12 : vector<1x128xi1> to vector<16x128xi1>
    %14 = vector.shape_cast %5 : vector<1x128xi1> to vector<1x128xi1>
    %15 = vector.broadcast %14 : vector<1x128xi1> to vector<16x128xi1>
    %16 = vector.shape_cast %8 : vector<1x128xi1> to vector<1x128xi1>
    %17 = vector.broadcast %16 : vector<1x128xi1> to vector<16x128xi1>
    %18 = tpu.iota {dimensions = array<i32: 0>} : vector<16x1xi32>
    %c0_6 = arith.constant 0 : index
    %c0_7 = arith.constant 0 : index
    %19 = vector.load %arg2[%c0_6, %c0_7] : memref<10x128xf32, #tpu.memory_space<vmem>>, vector<1x128xf32>
    %c1 = arith.constant 1 : index
    %c0_8 = arith.constant 0 : index
    %20 = vector.load %arg2[%c1, %c0_8] : memref<10x128xf32, #tpu.memory_space<vmem>>, vector<1x128xf32>
    %c2 = arith.constant 2 : index
    %c0_9 = arith.constant 0 : index
    %21 = vector.load %arg2[%c2, %c0_9] : memref<10x128xf32, #tpu.memory_space<vmem>>, vector<1x128xf32>
    %c3 = arith.constant 3 : index
    %c0_10 = arith.constant 0 : index
    %22 = vector.load %arg2[%c3, %c0_10] : memref<10x128xf32, #tpu.memory_space<vmem>>, vector<1x128xf32>
    %c4 = arith.constant 4 : index
    %c0_11 = arith.constant 0 : index
    %23 = vector.load %arg2[%c4, %c0_11] : memref<10x128xf32, #tpu.memory_space<vmem>>, vector<1x128xf32>
    %c5 = arith.constant 5 : index
    %c0_12 = arith.constant 0 : index
    %24 = vector.load %arg2[%c5, %c0_12] : memref<10x128xf32, #tpu.memory_space<vmem>>, vector<1x128xf32>
    %c0_13 = arith.constant 0 : index
    %c0_14 = arith.constant 0 : index
    %25 = vector.load %arg0[%c0_13, %c0_14] : memref<16x128xf32, #tpu.memory_space<vmem>>, vector<16x128xf32>
    %c16_i32 = arith.constant 16 : i32
    %26 = tpu.dynamic_rotate %25 by %c16_i32 dim 1 : vector<16x128xf32>, i32 -> vector<16x128xf32>
    %c32_i32 = arith.constant 32 : i32
    %27 = tpu.dynamic_rotate %25 by %c32_i32 dim 1 : vector<16x128xf32>, i32 -> vector<16x128xf32>
    %c48_i32 = arith.constant 48 : i32
    %28 = tpu.dynamic_rotate %25 by %c48_i32 dim 1 : vector<16x128xf32>, i32 -> vector<16x128xf32>
    %29 = arith.select %17, %27, %28 : vector<16x128xi1>, vector<16x128xf32>
    %30 = arith.select %15, %26, %29 : vector<16x128xi1>, vector<16x128xf32>
    %31 = arith.select %13, %25, %30 : vector<16x128xi1>, vector<16x128xf32>
    %c1_i32 = arith.constant 1 : i32
    %32 = tpu.dynamic_rotate %31 by %c1_i32 dim 0 : vector<16x128xf32>, i32 -> vector<16x128xf32>
    %c1_i32_15 = arith.constant 1 : i32
    %33 = vector.broadcast %c1_i32_15 : i32 to vector<16x1xi32>
    %34 = arith.cmpi slt, %18, %33 : vector<16x1xi32>
    %cst_16 = arith.constant 0.000000e+00 : f32
    %35 = vector.shape_cast %34 : vector<16x1xi1> to vector<16x1xi1>
    %36 = vector.broadcast %35 : vector<16x1xi1> to vector<16x128xi1>
    %37 = vector.broadcast %cst_16 : f32 to vector<16x128xf32>
    %38 = arith.select %36, %37, %32 : vector<16x128xi1>, vector<16x128xf32>
    %c1_i32_17 = arith.constant 1 : i32
    %39 = tpu.dynamic_rotate %38 by %c1_i32_17 dim 1 : vector<16x128xf32>, i32 -> vector<16x128xf32>
    %c0_18 = arith.constant 0 : index
    %c0_19 = arith.constant 0 : index
    %40 = vector.load %arg1[%c0_18, %c0_19] : memref<72x128xf32, #tpu.memory_space<vmem>>, vector<1x128xf32>
    %41 = vector.broadcast %40 : vector<1x128xf32> to vector<16x128xf32>
    %42 = arith.mulf %39, %41 : vector<16x128xf32>
    %c1_20 = arith.constant 1 : index
    %c0_21 = arith.constant 0 : index
    %43 = vector.load %arg1[%c1_20, %c0_21] : memref<72x128xf32, #tpu.memory_space<vmem>>, vector<1x128xf32>
    %44 = vector.broadcast %43 : vector<1x128xf32> to vector<16x128xf32>
    %45 = arith.mulf %38, %44 : vector<16x128xf32>
    %46 = arith.addf %42, %45 : vector<16x128xf32>
    %c127_i32 = arith.constant 127 : i32
    %47 = tpu.dynamic_rotate %38 by %c127_i32 dim 1 : vector<16x128xf32>, i32 -> vector<16x128xf32>
    %c2_22 = arith.constant 2 : index
    %c0_23 = arith.constant 0 : index
    %48 = vector.load %arg1[%c2_22, %c0_23] : memref<72x128xf32, #tpu.memory_space<vmem>>, vector<1x128xf32>
    %49 = vector.broadcast %48 : vector<1x128xf32> to vector<16x128xf32>
    %50 = arith.mulf %47, %49 : vector<16x128xf32>
    %51 = arith.addf %46, %50 : vector<16x128xf32>
    %c1_i32_24 = arith.constant 1 : i32
    %52 = tpu.dynamic_rotate %31 by %c1_i32_24 dim 1 : vector<16x128xf32>, i32 -> vector<16x128xf32>
    %c3_25 = arith.constant 3 : index
    %c0_26 = arith.constant 0 : index
    %53 = vector.load %arg1[%c3_25, %c0_26] : memref<72x128xf32, #tpu.memory_space<vmem>>, vector<1x128xf32>
    %54 = vector.broadcast %53 : vector<1x128xf32> to vector<16x128xf32>
    %55 = arith.mulf %52, %54 : vector<16x128xf32>
    %56 = arith.addf %51, %55 : vector<16x128xf32>
    %c4_27 = arith.constant 4 : index
    %c0_28 = arith.constant 0 : index
    %57 = vector.load %arg1[%c4_27, %c0_28] : memref<72x128xf32, #tpu.memory_space<vmem>>, vector<1x128xf32>
    %58 = vector.broadcast %57 : vector<1x128xf32> to vector<16x128xf32>
    %59 = arith.mulf %31, %58 : vector<16x128xf32>
    %60 = arith.addf %56, %59 : vector<16x128xf32>
    %c127_i32_29 = arith.constant 127 : i32
    %61 = tpu.dynamic_rotate %31 by %c127_i32_29 dim 1 : vector<16x128xf32>, i32 -> vector<16x128xf32>
    %c5_30 = arith.constant 5 : index
    %c0_31 = arith.constant 0 : index
    %62 = vector.load %arg1[%c5_30, %c0_31] : memref<72x128xf32, #tpu.memory_space<vmem>>, vector<1x128xf32>
    %63 = vector.broadcast %62 : vector<1x128xf32> to vector<16x128xf32>
    %64 = arith.mulf %61, %63 : vector<16x128xf32>
    %65 = arith.addf %60, %64 : vector<16x128xf32>
    %c15_i32 = arith.constant 15 : i32
    %66 = tpu.dynamic_rotate %31 by %c15_i32 dim 0 : vector<16x128xf32>, i32 -> vector<16x128xf32>
    %c15_i32_32 = arith.constant 15 : i32
    %67 = vector.broadcast %c15_i32_32 : i32 to vector<16x1xi32>
    %68 = arith.cmpi sge, %18, %67 : vector<16x1xi32>
    %cst_33 = arith.constant 0.000000e+00 : f32
    %69 = vector.shape_cast %68 : vector<16x1xi1> to vector<16x1xi1>
    %70 = vector.broadcast %69 : vector<16x1xi1> to vector<16x128xi1>
    %71 = vector.broadcast %cst_33 : f32 to vector<16x128xf32>
    %72 = arith.select %70, %71, %66 : vector<16x128xi1>, vector<16x128xf32>
    %c1_i32_34 = arith.constant 1 : i32
    %73 = tpu.dynamic_rotate %72 by %c1_i32_34 dim 1 : vector<16x128xf32>, i32 -> vector<16x128xf32>
    %c6_35 = arith.constant 6 : index
    %c0_36 = arith.constant 0 : index
    %74 = vector.load %arg1[%c6_35, %c0_36] : memref<72x128xf32, #tpu.memory_space<vmem>>, vector<1x128xf32>
    %75 = vector.broadcast %74 : vector<1x128xf32> to vector<16x128xf32>
    %76 = arith.mulf %73, %75 : vector<16x128xf32>
    %77 = arith.addf %65, %76 : vector<16x128xf32>
    %c7_37 = arith.constant 7 : index
    %c0_38 = arith.constant 0 : index
    %78 = vector.load %arg1[%c7_37, %c0_38] : memref<72x128xf32, #tpu.memory_space<vmem>>, vector<1x128xf32>
    %79 = vector.broadcast %78 : vector<1x128xf32> to vector<16x128xf32>
    %80 = arith.mulf %72, %79 : vector<16x128xf32>
    %81 = arith.addf %77, %80 : vector<16x128xf32>
    %c127_i32_39 = arith.constant 127 : i32
    %82 = tpu.dynamic_rotate %72 by %c127_i32_39 dim 1 : vector<16x128xf32>, i32 -> vector<16x128xf32>
    %c8_40 = arith.constant 8 : index
    %c0_41 = arith.constant 0 : index
    %83 = vector.load %arg1[%c8_40, %c0_41] : memref<72x128xf32, #tpu.memory_space<vmem>>, vector<1x128xf32>
    %84 = vector.broadcast %83 : vector<1x128xf32> to vector<16x128xf32>
    %85 = arith.mulf %82, %84 : vector<16x128xf32>
    %86 = arith.addf %81, %85 : vector<16x128xf32>
    %c112_i32 = arith.constant 112 : i32
    %87 = tpu.dynamic_rotate %25 by %c112_i32 dim 1 : vector<16x128xf32>, i32 -> vector<16x128xf32>
    %c16_i32_42 = arith.constant 16 : i32
    %88 = tpu.dynamic_rotate %25 by %c16_i32_42 dim 1 : vector<16x128xf32>, i32 -> vector<16x128xf32>
    %c32_i32_43 = arith.constant 32 : i32
    %89 = tpu.dynamic_rotate %25 by %c32_i32_43 dim 1 : vector<16x128xf32>, i32 -> vector<16x128xf32>
    %90 = arith.select %17, %88, %89 : vector<16x128xi1>, vector<16x128xf32>
    %91 = arith.select %15, %25, %90 : vector<16x128xi1>, vector<16x128xf32>
    %92 = arith.select %13, %87, %91 : vector<16x128xi1>, vector<16x128xf32>
    %c1_i32_44 = arith.constant 1 : i32
    %93 = tpu.dynamic_rotate %92 by %c1_i32_44 dim 0 : vector<16x128xf32>, i32 -> vector<16x128xf32>
    %c1_i32_45 = arith.constant 1 : i32
    %94 = vector.broadcast %c1_i32_45 : i32 to vector<16x1xi32>
    %95 = arith.cmpi slt, %18, %94 : vector<16x1xi32>
    %cst_46 = arith.constant 0.000000e+00 : f32
    %96 = vector.shape_cast %95 : vector<16x1xi1> to vector<16x1xi1>
    %97 = vector.broadcast %96 : vector<16x1xi1> to vector<16x128xi1>
    %98 = vector.broadcast %cst_46 : f32 to vector<16x128xf32>
    %99 = arith.select %97, %98, %93 : vector<16x128xi1>, vector<16x128xf32>
    %c1_i32_47 = arith.constant 1 : i32
    %100 = tpu.dynamic_rotate %99 by %c1_i32_47 dim 1 : vector<16x128xf32>, i32 -> vector<16x128xf32>
    %c9_48 = arith.constant 9 : index
    %c0_49 = arith.constant 0 : index
    %101 = vector.load %arg1[%c9_48, %c0_49] : memref<72x128xf32, #tpu.memory_space<vmem>>, vector<1x128xf32>
    %102 = vector.broadcast %101 : vector<1x128xf32> to vector<16x128xf32>
    %103 = arith.mulf %100, %102 : vector<16x128xf32>
    %c10 = arith.constant 10 : index
    %c0_50 = arith.constant 0 : index
    %104 = vector.load %arg1[%c10, %c0_50] : memref<72x128xf32, #tpu.memory_space<vmem>>, vector<1x128xf32>
    %105 = vector.broadcast %104 : vector<1x128xf32> to vector<16x128xf32>
    %106 = arith.mulf %99, %105 : vector<16x128xf32>
    %107 = arith.addf %103, %106 : vector<16x128xf32>
    %c127_i32_51 = arith.constant 127 : i32
    %108 = tpu.dynamic_rotate %99 by %c127_i32_51 dim 1 : vector<16x128xf32>, i32 -> vector<16x128xf32>
    %c11 = arith.constant 11 : index
    %c0_52 = arith.constant 0 : index
    %109 = vector.load %arg1[%c11, %c0_52] : memref<72x128xf32, #tpu.memory_space<vmem>>, vector<1x128xf32>
    %110 = vector.broadcast %109 : vector<1x128xf32> to vector<16x128xf32>
    %111 = arith.mulf %108, %110 : vector<16x128xf32>
    %112 = arith.addf %107, %111 : vector<16x128xf32>
    %c1_i32_53 = arith.constant 1 : i32
    %113 = tpu.dynamic_rotate %92 by %c1_i32_53 dim 1 : vector<16x128xf32>, i32 -> vector<16x128xf32>
    %c12 = arith.constant 12 : index
    %c0_54 = arith.constant 0 : index
    %114 = vector.load %arg1[%c12, %c0_54] : memref<72x128xf32, #tpu.memory_space<vmem>>, vector<1x128xf32>
    %115 = vector.broadcast %114 : vector<1x128xf32> to vector<16x128xf32>
    %116 = arith.mulf %113, %115 : vector<16x128xf32>
    %117 = arith.addf %112, %116 : vector<16x128xf32>
    %c13 = arith.constant 13 : index
    %c0_55 = arith.constant 0 : index
    %118 = vector.load %arg1[%c13, %c0_55] : memref<72x128xf32, #tpu.memory_space<vmem>>, vector<1x128xf32>
    %119 = vector.broadcast %118 : vector<1x128xf32> to vector<16x128xf32>
    %120 = arith.mulf %92, %119 : vector<16x128xf32>
    %121 = arith.addf %117, %120 : vector<16x128xf32>
    %c127_i32_56 = arith.constant 127 : i32
    %122 = tpu.dynamic_rotate %92 by %c127_i32_56 dim 1 : vector<16x128xf32>, i32 -> vector<16x128xf32>
    %c14 = arith.constant 14 : index
    %c0_57 = arith.constant 0 : index
    %123 = vector.load %arg1[%c14, %c0_57] : memref<72x128xf32, #tpu.memory_space<vmem>>, vector<1x128xf32>
    %124 = vector.broadcast %123 : vector<1x128xf32> to vector<16x128xf32>
    %125 = arith.mulf %122, %124 : vector<16x128xf32>
    %126 = arith.addf %121, %125 : vector<16x128xf32>
    %c15_i32_58 = arith.constant 15 : i32
    %127 = tpu.dynamic_rotate %92 by %c15_i32_58 dim 0 : vector<16x128xf32>, i32 -> vector<16x128xf32>
    %c15_i32_59 = arith.constant 15 : i32
    %128 = vector.broadcast %c15_i32_59 : i32 to vector<16x1xi32>
    %129 = arith.cmpi sge, %18, %128 : vector<16x1xi32>
    %cst_60 = arith.constant 0.000000e+00 : f32
    %130 = vector.shape_cast %129 : vector<16x1xi1> to vector<16x1xi1>
    %131 = vector.broadcast %130 : vector<16x1xi1> to vector<16x128xi1>
    %132 = vector.broadcast %cst_60 : f32 to vector<16x128xf32>
    %133 = arith.select %131, %132, %127 : vector<16x128xi1>, vector<16x128xf32>
    %c1_i32_61 = arith.constant 1 : i32
    %134 = tpu.dynamic_rotate %133 by %c1_i32_61 dim 1 : vector<16x128xf32>, i32 -> vector<16x128xf32>
    %c15 = arith.constant 15 : index
    %c0_62 = arith.constant 0 : index
    %135 = vector.load %arg1[%c15, %c0_62] : memref<72x128xf32, #tpu.memory_space<vmem>>, vector<1x128xf32>
    %136 = vector.broadcast %135 : vector<1x128xf32> to vector<16x128xf32>
    %137 = arith.mulf %134, %136 : vector<16x128xf32>
    %138 = arith.addf %126, %137 : vector<16x128xf32>
    %c16 = arith.constant 16 : index
    %c0_63 = arith.constant 0 : index
    %139 = vector.load %arg1[%c16, %c0_63] : memref<72x128xf32, #tpu.memory_space<vmem>>, vector<1x128xf32>
    %140 = vector.broadcast %139 : vector<1x128xf32> to vector<16x128xf32>
    %141 = arith.mulf %133, %140 : vector<16x128xf32>
    %142 = arith.addf %138, %141 : vector<16x128xf32>
    %c127_i32_64 = arith.constant 127 : i32
    %143 = tpu.dynamic_rotate %133 by %c127_i32_64 dim 1 : vector<16x128xf32>, i32 -> vector<16x128xf32>
    %c17 = arith.constant 17 : index
    %c0_65 = arith.constant 0 : index
    %144 = vector.load %arg1[%c17, %c0_65] : memref<72x128xf32, #tpu.memory_space<vmem>>, vector<1x128xf32>
    %145 = vector.broadcast %144 : vector<1x128xf32> to vector<16x128xf32>
    %146 = arith.mulf %143, %145 : vector<16x128xf32>
    %147 = arith.addf %142, %146 : vector<16x128xf32>
    %c96_i32 = arith.constant 96 : i32
    %148 = tpu.dynamic_rotate %25 by %c96_i32 dim 1 : vector<16x128xf32>, i32 -> vector<16x128xf32>
    %c112_i32_66 = arith.constant 112 : i32
    %149 = tpu.dynamic_rotate %25 by %c112_i32_66 dim 1 : vector<16x128xf32>, i32 -> vector<16x128xf32>
    %c16_i32_67 = arith.constant 16 : i32
    %150 = tpu.dynamic_rotate %25 by %c16_i32_67 dim 1 : vector<16x128xf32>, i32 -> vector<16x128xf32>
    %151 = arith.select %17, %25, %150 : vector<16x128xi1>, vector<16x128xf32>
    %152 = arith.select %15, %149, %151 : vector<16x128xi1>, vector<16x128xf32>
    %153 = arith.select %13, %148, %152 : vector<16x128xi1>, vector<16x128xf32>
    %c1_i32_68 = arith.constant 1 : i32
    %154 = tpu.dynamic_rotate %153 by %c1_i32_68 dim 0 : vector<16x128xf32>, i32 -> vector<16x128xf32>
    %c1_i32_69 = arith.constant 1 : i32
    %155 = vector.broadcast %c1_i32_69 : i32 to vector<16x1xi32>
    %156 = arith.cmpi slt, %18, %155 : vector<16x1xi32>
    %cst_70 = arith.constant 0.000000e+00 : f32
    %157 = vector.shape_cast %156 : vector<16x1xi1> to vector<16x1xi1>
    %158 = vector.broadcast %157 : vector<16x1xi1> to vector<16x128xi1>
    %159 = vector.broadcast %cst_70 : f32 to vector<16x128xf32>
    %160 = arith.select %158, %159, %154 : vector<16x128xi1>, vector<16x128xf32>
    %c1_i32_71 = arith.constant 1 : i32
    %161 = tpu.dynamic_rotate %160 by %c1_i32_71 dim 1 : vector<16x128xf32>, i32 -> vector<16x128xf32>
    %c18 = arith.constant 18 : index
    %c0_72 = arith.constant 0 : index
    %162 = vector.load %arg1[%c18, %c0_72] : memref<72x128xf32, #tpu.memory_space<vmem>>, vector<1x128xf32>
    %163 = vector.broadcast %162 : vector<1x128xf32> to vector<16x128xf32>
    %164 = arith.mulf %161, %163 : vector<16x128xf32>
    %c19 = arith.constant 19 : index
    %c0_73 = arith.constant 0 : index
    %165 = vector.load %arg1[%c19, %c0_73] : memref<72x128xf32, #tpu.memory_space<vmem>>, vector<1x128xf32>
    %166 = vector.broadcast %165 : vector<1x128xf32> to vector<16x128xf32>
    %167 = arith.mulf %160, %166 : vector<16x128xf32>
    %168 = arith.addf %164, %167 : vector<16x128xf32>
    %c127_i32_74 = arith.constant 127 : i32
    %169 = tpu.dynamic_rotate %160 by %c127_i32_74 dim 1 : vector<16x128xf32>, i32 -> vector<16x128xf32>
    %c20 = arith.constant 20 : index
    %c0_75 = arith.constant 0 : index
    %170 = vector.load %arg1[%c20, %c0_75] : memref<72x128xf32, #tpu.memory_space<vmem>>, vector<1x128xf32>
    %171 = vector.broadcast %170 : vector<1x128xf32> to vector<16x128xf32>
    %172 = arith.mulf %169, %171 : vector<16x128xf32>
    %173 = arith.addf %168, %172 : vector<16x128xf32>
    %c1_i32_76 = arith.constant 1 : i32
    %174 = tpu.dynamic_rotate %153 by %c1_i32_76 dim 1 : vector<16x128xf32>, i32 -> vector<16x128xf32>
    %c21 = arith.constant 21 : index
    %c0_77 = arith.constant 0 : index
    %175 = vector.load %arg1[%c21, %c0_77] : memref<72x128xf32, #tpu.memory_space<vmem>>, vector<1x128xf32>
    %176 = vector.broadcast %175 : vector<1x128xf32> to vector<16x128xf32>
    %177 = arith.mulf %174, %176 : vector<16x128xf32>
    %178 = arith.addf %173, %177 : vector<16x128xf32>
    %c22 = arith.constant 22 : index
    %c0_78 = arith.constant 0 : index
    %179 = vector.load %arg1[%c22, %c0_78] : memref<72x128xf32, #tpu.memory_space<vmem>>, vector<1x128xf32>
    %180 = vector.broadcast %179 : vector<1x128xf32> to vector<16x128xf32>
    %181 = arith.mulf %153, %180 : vector<16x128xf32>
    %182 = arith.addf %178, %181 : vector<16x128xf32>
    %c127_i32_79 = arith.constant 127 : i32
    %183 = tpu.dynamic_rotate %153 by %c127_i32_79 dim 1 : vector<16x128xf32>, i32 -> vector<16x128xf32>
    %c23 = arith.constant 23 : index
    %c0_80 = arith.constant 0 : index
    %184 = vector.load %arg1[%c23, %c0_80] : memref<72x128xf32, #tpu.memory_space<vmem>>, vector<1x128xf32>
    %185 = vector.broadcast %184 : vector<1x128xf32> to vector<16x128xf32>
    %186 = arith.mulf %183, %185 : vector<16x128xf32>
    %187 = arith.addf %182, %186 : vector<16x128xf32>
    %c15_i32_81 = arith.constant 15 : i32
    %188 = tpu.dynamic_rotate %153 by %c15_i32_81 dim 0 : vector<16x128xf32>, i32 -> vector<16x128xf32>
    %c15_i32_82 = arith.constant 15 : i32
    %189 = vector.broadcast %c15_i32_82 : i32 to vector<16x1xi32>
    %190 = arith.cmpi sge, %18, %189 : vector<16x1xi32>
    %cst_83 = arith.constant 0.000000e+00 : f32
    %191 = vector.shape_cast %190 : vector<16x1xi1> to vector<16x1xi1>
    %192 = vector.broadcast %191 : vector<16x1xi1> to vector<16x128xi1>
    %193 = vector.broadcast %cst_83 : f32 to vector<16x128xf32>
    %194 = arith.select %192, %193, %188 : vector<16x128xi1>, vector<16x128xf32>
    %c1_i32_84 = arith.constant 1 : i32
    %195 = tpu.dynamic_rotate %194 by %c1_i32_84 dim 1 : vector<16x128xf32>, i32 -> vector<16x128xf32>
    %c24 = arith.constant 24 : index
    %c0_85 = arith.constant 0 : index
    %196 = vector.load %arg1[%c24, %c0_85] : memref<72x128xf32, #tpu.memory_space<vmem>>, vector<1x128xf32>
    %197 = vector.broadcast %196 : vector<1x128xf32> to vector<16x128xf32>
    %198 = arith.mulf %195, %197 : vector<16x128xf32>
    %199 = arith.addf %187, %198 : vector<16x128xf32>
    %c25 = arith.constant 25 : index
    %c0_86 = arith.constant 0 : index
    %200 = vector.load %arg1[%c25, %c0_86] : memref<72x128xf32, #tpu.memory_space<vmem>>, vector<1x128xf32>
    %201 = vector.broadcast %200 : vector<1x128xf32> to vector<16x128xf32>
    %202 = arith.mulf %194, %201 : vector<16x128xf32>
    %203 = arith.addf %199, %202 : vector<16x128xf32>
    %c127_i32_87 = arith.constant 127 : i32
    %204 = tpu.dynamic_rotate %194 by %c127_i32_87 dim 1 : vector<16x128xf32>, i32 -> vector<16x128xf32>
    %c26 = arith.constant 26 : index
    %c0_88 = arith.constant 0 : index
    %205 = vector.load %arg1[%c26, %c0_88] : memref<72x128xf32, #tpu.memory_space<vmem>>, vector<1x128xf32>
    %206 = vector.broadcast %205 : vector<1x128xf32> to vector<16x128xf32>
    %207 = arith.mulf %204, %206 : vector<16x128xf32>
    %208 = arith.addf %203, %207 : vector<16x128xf32>
    %c80_i32 = arith.constant 80 : i32
    %209 = tpu.dynamic_rotate %25 by %c80_i32 dim 1 : vector<16x128xf32>, i32 -> vector<16x128xf32>
    %c96_i32_89 = arith.constant 96 : i32
    %210 = tpu.dynamic_rotate %25 by %c96_i32_89 dim 1 : vector<16x128xf32>, i32 -> vector<16x128xf32>
    %c112_i32_90 = arith.constant 112 : i32
    %211 = tpu.dynamic_rotate %25 by %c112_i32_90 dim 1 : vector<16x128xf32>, i32 -> vector<16x128xf32>
    %212 = arith.select %17, %211, %25 : vector<16x128xi1>, vector<16x128xf32>
    %213 = arith.select %15, %210, %212 : vector<16x128xi1>, vector<16x128xf32>
    %214 = arith.select %13, %209, %213 : vector<16x128xi1>, vector<16x128xf32>
    %c1_i32_91 = arith.constant 1 : i32
    %215 = tpu.dynamic_rotate %214 by %c1_i32_91 dim 0 : vector<16x128xf32>, i32 -> vector<16x128xf32>
    %c1_i32_92 = arith.constant 1 : i32
    %216 = vector.broadcast %c1_i32_92 : i32 to vector<16x1xi32>
    %217 = arith.cmpi slt, %18, %216 : vector<16x1xi32>
    %cst_93 = arith.constant 0.000000e+00 : f32
    %218 = vector.shape_cast %217 : vector<16x1xi1> to vector<16x1xi1>
    %219 = vector.broadcast %218 : vector<16x1xi1> to vector<16x128xi1>
    %220 = vector.broadcast %cst_93 : f32 to vector<16x128xf32>
    %221 = arith.select %219, %220, %215 : vector<16x128xi1>, vector<16x128xf32>
    %c1_i32_94 = arith.constant 1 : i32
    %222 = tpu.dynamic_rotate %221 by %c1_i32_94 dim 1 : vector<16x128xf32>, i32 -> vector<16x128xf32>
    %c27 = arith.constant 27 : index
    %c0_95 = arith.constant 0 : index
    %223 = vector.load %arg1[%c27, %c0_95] : memref<72x128xf32, #tpu.memory_space<vmem>>, vector<1x128xf32>
    %224 = vector.broadcast %223 : vector<1x128xf32> to vector<16x128xf32>
    %225 = arith.mulf %222, %224 : vector<16x128xf32>
    %c28 = arith.constant 28 : index
    %c0_96 = arith.constant 0 : index
    %226 = vector.load %arg1[%c28, %c0_96] : memref<72x128xf32, #tpu.memory_space<vmem>>, vector<1x128xf32>
    %227 = vector.broadcast %226 : vector<1x128xf32> to vector<16x128xf32>
    %228 = arith.mulf %221, %227 : vector<16x128xf32>
    %229 = arith.addf %225, %228 : vector<16x128xf32>
    %c127_i32_97 = arith.constant 127 : i32
    %230 = tpu.dynamic_rotate %221 by %c127_i32_97 dim 1 : vector<16x128xf32>, i32 -> vector<16x128xf32>
    %c29 = arith.constant 29 : index
    %c0_98 = arith.constant 0 : index
    %231 = vector.load %arg1[%c29, %c0_98] : memref<72x128xf32, #tpu.memory_space<vmem>>, vector<1x128xf32>
    %232 = vector.broadcast %231 : vector<1x128xf32> to vector<16x128xf32>
    %233 = arith.mulf %230, %232 : vector<16x128xf32>
    %234 = arith.addf %229, %233 : vector<16x128xf32>
    %c1_i32_99 = arith.constant 1 : i32
    %235 = tpu.dynamic_rotate %214 by %c1_i32_99 dim 1 : vector<16x128xf32>, i32 -> vector<16x128xf32>
    %c30 = arith.constant 30 : index
    %c0_100 = arith.constant 0 : index
    %236 = vector.load %arg1[%c30, %c0_100] : memref<72x128xf32, #tpu.memory_space<vmem>>, vector<1x128xf32>
    %237 = vector.broadcast %236 : vector<1x128xf32> to vector<16x128xf32>
    %238 = arith.mulf %235, %237 : vector<16x128xf32>
    %239 = arith.addf %234, %238 : vector<16x128xf32>
    %c31 = arith.constant 31 : index
    %c0_101 = arith.constant 0 : index
    %240 = vector.load %arg1[%c31, %c0_101] : memref<72x128xf32, #tpu.memory_space<vmem>>, vector<1x128xf32>
    %241 = vector.broadcast %240 : vector<1x128xf32> to vector<16x128xf32>
    %242 = arith.mulf %214, %241 : vector<16x128xf32>
    %243 = arith.addf %239, %242 : vector<16x128xf32>
    %c127_i32_102 = arith.constant 127 : i32
    %244 = tpu.dynamic_rotate %214 by %c127_i32_102 dim 1 : vector<16x128xf32>, i32 -> vector<16x128xf32>
    %c32 = arith.constant 32 : index
    %c0_103 = arith.constant 0 : index
    %245 = vector.load %arg1[%c32, %c0_103] : memref<72x128xf32, #tpu.memory_space<vmem>>, vector<1x128xf32>
    %246 = vector.broadcast %245 : vector<1x128xf32> to vector<16x128xf32>
    %247 = arith.mulf %244, %246 : vector<16x128xf32>
    %248 = arith.addf %243, %247 : vector<16x128xf32>
    %c15_i32_104 = arith.constant 15 : i32
    %249 = tpu.dynamic_rotate %214 by %c15_i32_104 dim 0 : vector<16x128xf32>, i32 -> vector<16x128xf32>
    %c15_i32_105 = arith.constant 15 : i32
    %250 = vector.broadcast %c15_i32_105 : i32 to vector<16x1xi32>
    %251 = arith.cmpi sge, %18, %250 : vector<16x1xi32>
    %cst_106 = arith.constant 0.000000e+00 : f32
    %252 = vector.shape_cast %251 : vector<16x1xi1> to vector<16x1xi1>
    %253 = vector.broadcast %252 : vector<16x1xi1> to vector<16x128xi1>
    %254 = vector.broadcast %cst_106 : f32 to vector<16x128xf32>
    %255 = arith.select %253, %254, %249 : vector<16x128xi1>, vector<16x128xf32>
    %c1_i32_107 = arith.constant 1 : i32
    %256 = tpu.dynamic_rotate %255 by %c1_i32_107 dim 1 : vector<16x128xf32>, i32 -> vector<16x128xf32>
    %c33 = arith.constant 33 : index
    %c0_108 = arith.constant 0 : index
    %257 = vector.load %arg1[%c33, %c0_108] : memref<72x128xf32, #tpu.memory_space<vmem>>, vector<1x128xf32>
    %258 = vector.broadcast %257 : vector<1x128xf32> to vector<16x128xf32>
    %259 = arith.mulf %256, %258 : vector<16x128xf32>
    %260 = arith.addf %248, %259 : vector<16x128xf32>
    %c34 = arith.constant 34 : index
    %c0_109 = arith.constant 0 : index
    %261 = vector.load %arg1[%c34, %c0_109] : memref<72x128xf32, #tpu.memory_space<vmem>>, vector<1x128xf32>
    %262 = vector.broadcast %261 : vector<1x128xf32> to vector<16x128xf32>
    %263 = arith.mulf %255, %262 : vector<16x128xf32>
    %264 = arith.addf %260, %263 : vector<16x128xf32>
    %c127_i32_110 = arith.constant 127 : i32
    %265 = tpu.dynamic_rotate %255 by %c127_i32_110 dim 1 : vector<16x128xf32>, i32 -> vector<16x128xf32>
    %c35 = arith.constant 35 : index
    %c0_111 = arith.constant 0 : index
    %266 = vector.load %arg1[%c35, %c0_111] : memref<72x128xf32, #tpu.memory_space<vmem>>, vector<1x128xf32>
    %267 = vector.broadcast %266 : vector<1x128xf32> to vector<16x128xf32>
    %268 = arith.mulf %265, %267 : vector<16x128xf32>
    %269 = arith.addf %264, %268 : vector<16x128xf32>
    %270 = arith.addf %86, %147 : vector<16x128xf32>
    %271 = arith.addf %208, %269 : vector<16x128xf32>
    %272 = arith.addf %270, %271 : vector<16x128xf32>
    %273 = vector.broadcast %19 : vector<1x128xf32> to vector<16x128xf32>
    %274 = arith.addf %272, %273 : vector<16x128xf32>
    %cst_112 = arith.constant dense<0.000000e+00> : vector<128xf32>
    %275 = vector.multi_reduction <add>, %274, %cst_112 [0] : vector<16x128xf32> to vector<128xf32>
    %276 = vector.shape_cast %275 : vector<128xf32> to vector<1x128xf32>
    %277 = arith.mulf %274, %274 : vector<16x128xf32>
    %cst_113 = arith.constant dense<0.000000e+00> : vector<128xf32>
    %278 = vector.multi_reduction <add>, %277, %cst_113 [0] : vector<16x128xf32> to vector<128xf32>
    %279 = vector.shape_cast %278 : vector<128xf32> to vector<1x128xf32>
    %cst_114 = arith.constant 0.000000e+00 : f32
    %280 = vector.broadcast %cst_114 : f32 to vector<1x128xf32>
    %cst_115 = arith.constant 0.000000e+00 : f32
    %281 = vector.broadcast %cst_115 : f32 to vector<1x128xf32>
    %cst_116 = arith.constant 0.000000e+00 : f32
    %282 = vector.broadcast %cst_116 : f32 to vector<1x128xf32>
    %283 = arith.select %2, %276, %282 : vector<1x128xi1>, vector<1x128xf32>
    %cst_117 = arith.constant dense<0.000000e+00> : vector<1xf32>
    %284 = vector.multi_reduction <add>, %283, %cst_117 [1] : vector<1x128xf32> to vector<1xf32>
    %285 = vector.shape_cast %284 : vector<1xf32> to vector<1x1xf32>
    %cst_118 = arith.constant 0.001953125 : f32
    %286 = vector.broadcast %cst_118 : f32 to vector<1x1xf32>
    %287 = arith.mulf %285, %286 : vector<1x1xf32>
    %cst_119 = arith.constant 0.000000e+00 : f32
    %288 = vector.broadcast %cst_119 : f32 to vector<1x128xf32>
    %289 = arith.select %2, %279, %288 : vector<1x128xi1>, vector<1x128xf32>
    %cst_120 = arith.constant dense<0.000000e+00> : vector<1xf32>
    %290 = vector.multi_reduction <add>, %289, %cst_120 [1] : vector<1x128xf32> to vector<1xf32>
    %291 = vector.shape_cast %290 : vector<1xf32> to vector<1x1xf32>
    %cst_121 = arith.constant 0.001953125 : f32
    %292 = vector.broadcast %cst_121 : f32 to vector<1x1xf32>
    %293 = arith.mulf %291, %292 : vector<1x1xf32>
    %294 = vector.shape_cast %287 : vector<1x1xf32> to vector<1x1xf32>
    %295 = vector.broadcast %294 : vector<1x1xf32> to vector<1x128xf32>
    %296 = arith.select %2, %295, %280 : vector<1x128xi1>, vector<1x128xf32>
    %297 = vector.shape_cast %293 : vector<1x1xf32> to vector<1x1xf32>
    %298 = vector.broadcast %297 : vector<1x1xf32> to vector<1x128xf32>
    %299 = arith.select %2, %298, %281 : vector<1x128xi1>, vector<1x128xf32>
    %cst_122 = arith.constant 0.000000e+00 : f32
    %300 = vector.broadcast %cst_122 : f32 to vector<1x128xf32>
    %301 = arith.select %5, %276, %300 : vector<1x128xi1>, vector<1x128xf32>
    %cst_123 = arith.constant dense<0.000000e+00> : vector<1xf32>
    %302 = vector.multi_reduction <add>, %301, %cst_123 [1] : vector<1x128xf32> to vector<1xf32>
    %303 = vector.shape_cast %302 : vector<1xf32> to vector<1x1xf32>
    %cst_124 = arith.constant 0.001953125 : f32
    %304 = vector.broadcast %cst_124 : f32 to vector<1x1xf32>
    %305 = arith.mulf %303, %304 : vector<1x1xf32>
    %cst_125 = arith.constant 0.000000e+00 : f32
    %306 = vector.broadcast %cst_125 : f32 to vector<1x128xf32>
    %307 = arith.select %5, %279, %306 : vector<1x128xi1>, vector<1x128xf32>
    %cst_126 = arith.constant dense<0.000000e+00> : vector<1xf32>
    %308 = vector.multi_reduction <add>, %307, %cst_126 [1] : vector<1x128xf32> to vector<1xf32>
    %309 = vector.shape_cast %308 : vector<1xf32> to vector<1x1xf32>
    %cst_127 = arith.constant 0.001953125 : f32
    %310 = vector.broadcast %cst_127 : f32 to vector<1x1xf32>
    %311 = arith.mulf %309, %310 : vector<1x1xf32>
    %312 = vector.shape_cast %305 : vector<1x1xf32> to vector<1x1xf32>
    %313 = vector.broadcast %312 : vector<1x1xf32> to vector<1x128xf32>
    %314 = arith.select %5, %313, %296 : vector<1x128xi1>, vector<1x128xf32>
    %315 = vector.shape_cast %311 : vector<1x1xf32> to vector<1x1xf32>
    %316 = vector.broadcast %315 : vector<1x1xf32> to vector<1x128xf32>
    %317 = arith.select %5, %316, %299 : vector<1x128xi1>, vector<1x128xf32>
    %cst_128 = arith.constant 0.000000e+00 : f32
    %318 = vector.broadcast %cst_128 : f32 to vector<1x128xf32>
    %319 = arith.select %8, %276, %318 : vector<1x128xi1>, vector<1x128xf32>
    %cst_129 = arith.constant dense<0.000000e+00> : vector<1xf32>
    %320 = vector.multi_reduction <add>, %319, %cst_129 [1] : vector<1x128xf32> to vector<1xf32>
    %321 = vector.shape_cast %320 : vector<1xf32> to vector<1x1xf32>
    %cst_130 = arith.constant 0.001953125 : f32
    %322 = vector.broadcast %cst_130 : f32 to vector<1x1xf32>
    %323 = arith.mulf %321, %322 : vector<1x1xf32>
    %cst_131 = arith.constant 0.000000e+00 : f32
    %324 = vector.broadcast %cst_131 : f32 to vector<1x128xf32>
    %325 = arith.select %8, %279, %324 : vector<1x128xi1>, vector<1x128xf32>
    %cst_132 = arith.constant dense<0.000000e+00> : vector<1xf32>
    %326 = vector.multi_reduction <add>, %325, %cst_132 [1] : vector<1x128xf32> to vector<1xf32>
    %327 = vector.shape_cast %326 : vector<1xf32> to vector<1x1xf32>
    %cst_133 = arith.constant 0.001953125 : f32
    %328 = vector.broadcast %cst_133 : f32 to vector<1x1xf32>
    %329 = arith.mulf %327, %328 : vector<1x1xf32>
    %330 = vector.shape_cast %323 : vector<1x1xf32> to vector<1x1xf32>
    %331 = vector.broadcast %330 : vector<1x1xf32> to vector<1x128xf32>
    %332 = arith.select %8, %331, %314 : vector<1x128xi1>, vector<1x128xf32>
    %333 = vector.shape_cast %329 : vector<1x1xf32> to vector<1x1xf32>
    %334 = vector.broadcast %333 : vector<1x1xf32> to vector<1x128xf32>
    %335 = arith.select %8, %334, %317 : vector<1x128xi1>, vector<1x128xf32>
    %cst_134 = arith.constant 0.000000e+00 : f32
    %336 = vector.broadcast %cst_134 : f32 to vector<1x128xf32>
    %337 = arith.select %11, %276, %336 : vector<1x128xi1>, vector<1x128xf32>
    %cst_135 = arith.constant dense<0.000000e+00> : vector<1xf32>
    %338 = vector.multi_reduction <add>, %337, %cst_135 [1] : vector<1x128xf32> to vector<1xf32>
    %339 = vector.shape_cast %338 : vector<1xf32> to vector<1x1xf32>
    %cst_136 = arith.constant 0.001953125 : f32
    %340 = vector.broadcast %cst_136 : f32 to vector<1x1xf32>
    %341 = arith.mulf %339, %340 : vector<1x1xf32>
    %cst_137 = arith.constant 0.000000e+00 : f32
    %342 = vector.broadcast %cst_137 : f32 to vector<1x128xf32>
    %343 = arith.select %11, %279, %342 : vector<1x128xi1>, vector<1x128xf32>
    %cst_138 = arith.constant dense<0.000000e+00> : vector<1xf32>
    %344 = vector.multi_reduction <add>, %343, %cst_138 [1] : vector<1x128xf32> to vector<1xf32>
    %345 = vector.shape_cast %344 : vector<1xf32> to vector<1x1xf32>
    %cst_139 = arith.constant 0.001953125 : f32
    %346 = vector.broadcast %cst_139 : f32 to vector<1x1xf32>
    %347 = arith.mulf %345, %346 : vector<1x1xf32>
    %348 = vector.shape_cast %341 : vector<1x1xf32> to vector<1x1xf32>
    %349 = vector.broadcast %348 : vector<1x1xf32> to vector<1x128xf32>
    %350 = arith.select %11, %349, %332 : vector<1x128xi1>, vector<1x128xf32>
    %351 = vector.shape_cast %347 : vector<1x1xf32> to vector<1x1xf32>
    %352 = vector.broadcast %351 : vector<1x1xf32> to vector<1x128xf32>
    %353 = arith.select %11, %352, %335 : vector<1x128xi1>, vector<1x128xf32>
    %354 = arith.mulf %350, %350 : vector<1x128xf32>
    %355 = arith.subf %353, %354 : vector<1x128xf32>
    %cst_140 = arith.constant 9.99999974E-6 : f32
    %356 = vector.broadcast %cst_140 : f32 to vector<1x128xf32>
    %357 = arith.addf %355, %356 : vector<1x128xf32>
    %358 = math.rsqrt %357 : vector<1x128xf32>
    %359 = arith.mulf %358, %21 : vector<1x128xf32>
    %360 = vector.broadcast %350 : vector<1x128xf32> to vector<16x128xf32>
    %361 = arith.subf %274, %360 : vector<16x128xf32>
    %362 = vector.broadcast %359 : vector<1x128xf32> to vector<16x128xf32>
    %363 = arith.mulf %361, %362 : vector<16x128xf32>
    %364 = vector.broadcast %22 : vector<1x128xf32> to vector<16x128xf32>
    %365 = arith.addf %363, %364 : vector<16x128xf32>
    %cst_141 = arith.constant 0.000000e+00 : f32
    %366 = vector.broadcast %cst_141 : f32 to vector<16x128xf32>
    %367 = arith.maximumf %365, %366 : vector<16x128xf32>
    %c16_i32_142 = arith.constant 16 : i32
    %368 = tpu.dynamic_rotate %367 by %c16_i32_142 dim 1 : vector<16x128xf32>, i32 -> vector<16x128xf32>
    %c32_i32_143 = arith.constant 32 : i32
    %369 = tpu.dynamic_rotate %367 by %c32_i32_143 dim 1 : vector<16x128xf32>, i32 -> vector<16x128xf32>
    %c48_i32_144 = arith.constant 48 : i32
    %370 = tpu.dynamic_rotate %367 by %c48_i32_144 dim 1 : vector<16x128xf32>, i32 -> vector<16x128xf32>
    %371 = arith.select %17, %369, %370 : vector<16x128xi1>, vector<16x128xf32>
    %372 = arith.select %15, %368, %371 : vector<16x128xi1>, vector<16x128xf32>
    %373 = arith.select %13, %367, %372 : vector<16x128xi1>, vector<16x128xf32>
    %c1_i32_145 = arith.constant 1 : i32
    %374 = tpu.dynamic_rotate %373 by %c1_i32_145 dim 0 : vector<16x128xf32>, i32 -> vector<16x128xf32>
    %c1_i32_146 = arith.constant 1 : i32
    %375 = vector.broadcast %c1_i32_146 : i32 to vector<16x1xi32>
    %376 = arith.cmpi slt, %18, %375 : vector<16x1xi32>
    %cst_147 = arith.constant 0.000000e+00 : f32
    %377 = vector.shape_cast %376 : vector<16x1xi1> to vector<16x1xi1>
    %378 = vector.broadcast %377 : vector<16x1xi1> to vector<16x128xi1>
    %379 = vector.broadcast %cst_147 : f32 to vector<16x128xf32>
    %380 = arith.select %378, %379, %374 : vector<16x128xi1>, vector<16x128xf32>
    %c1_i32_148 = arith.constant 1 : i32
    %381 = tpu.dynamic_rotate %380 by %c1_i32_148 dim 1 : vector<16x128xf32>, i32 -> vector<16x128xf32>
    %c36 = arith.constant 36 : index
    %c0_149 = arith.constant 0 : index
    %382 = vector.load %arg1[%c36, %c0_149] : memref<72x128xf32, #tpu.memory_space<vmem>>, vector<1x128xf32>
    %383 = vector.broadcast %382 : vector<1x128xf32> to vector<16x128xf32>
    %384 = arith.mulf %381, %383 : vector<16x128xf32>
    %c37 = arith.constant 37 : index
    %c0_150 = arith.constant 0 : index
    %385 = vector.load %arg1[%c37, %c0_150] : memref<72x128xf32, #tpu.memory_space<vmem>>, vector<1x128xf32>
    %386 = vector.broadcast %385 : vector<1x128xf32> to vector<16x128xf32>
    %387 = arith.mulf %380, %386 : vector<16x128xf32>
    %388 = arith.addf %384, %387 : vector<16x128xf32>
    %c127_i32_151 = arith.constant 127 : i32
    %389 = tpu.dynamic_rotate %380 by %c127_i32_151 dim 1 : vector<16x128xf32>, i32 -> vector<16x128xf32>
    %c38 = arith.constant 38 : index
    %c0_152 = arith.constant 0 : index
    %390 = vector.load %arg1[%c38, %c0_152] : memref<72x128xf32, #tpu.memory_space<vmem>>, vector<1x128xf32>
    %391 = vector.broadcast %390 : vector<1x128xf32> to vector<16x128xf32>
    %392 = arith.mulf %389, %391 : vector<16x128xf32>
    %393 = arith.addf %388, %392 : vector<16x128xf32>
    %c1_i32_153 = arith.constant 1 : i32
    %394 = tpu.dynamic_rotate %373 by %c1_i32_153 dim 1 : vector<16x128xf32>, i32 -> vector<16x128xf32>
    %c39 = arith.constant 39 : index
    %c0_154 = arith.constant 0 : index
    %395 = vector.load %arg1[%c39, %c0_154] : memref<72x128xf32, #tpu.memory_space<vmem>>, vector<1x128xf32>
    %396 = vector.broadcast %395 : vector<1x128xf32> to vector<16x128xf32>
    %397 = arith.mulf %394, %396 : vector<16x128xf32>
    %398 = arith.addf %393, %397 : vector<16x128xf32>
    %c40 = arith.constant 40 : index
    %c0_155 = arith.constant 0 : index
    %399 = vector.load %arg1[%c40, %c0_155] : memref<72x128xf32, #tpu.memory_space<vmem>>, vector<1x128xf32>
    %400 = vector.broadcast %399 : vector<1x128xf32> to vector<16x128xf32>
    %401 = arith.mulf %373, %400 : vector<16x128xf32>
    %402 = arith.addf %398, %401 : vector<16x128xf32>
    %c127_i32_156 = arith.constant 127 : i32
    %403 = tpu.dynamic_rotate %373 by %c127_i32_156 dim 1 : vector<16x128xf32>, i32 -> vector<16x128xf32>
    %c41 = arith.constant 41 : index
    %c0_157 = arith.constant 0 : index
    %404 = vector.load %arg1[%c41, %c0_157] : memref<72x128xf32, #tpu.memory_space<vmem>>, vector<1x128xf32>
    %405 = vector.broadcast %404 : vector<1x128xf32> to vector<16x128xf32>
    %406 = arith.mulf %403, %405 : vector<16x128xf32>
    %407 = arith.addf %402, %406 : vector<16x128xf32>
    %c15_i32_158 = arith.constant 15 : i32
    %408 = tpu.dynamic_rotate %373 by %c15_i32_158 dim 0 : vector<16x128xf32>, i32 -> vector<16x128xf32>
    %c15_i32_159 = arith.constant 15 : i32
    %409 = vector.broadcast %c15_i32_159 : i32 to vector<16x1xi32>
    %410 = arith.cmpi sge, %18, %409 : vector<16x1xi32>
    %cst_160 = arith.constant 0.000000e+00 : f32
    %411 = vector.shape_cast %410 : vector<16x1xi1> to vector<16x1xi1>
    %412 = vector.broadcast %411 : vector<16x1xi1> to vector<16x128xi1>
    %413 = vector.broadcast %cst_160 : f32 to vector<16x128xf32>
    %414 = arith.select %412, %413, %408 : vector<16x128xi1>, vector<16x128xf32>
    %c1_i32_161 = arith.constant 1 : i32
    %415 = tpu.dynamic_rotate %414 by %c1_i32_161 dim 1 : vector<16x128xf32>, i32 -> vector<16x128xf32>
    %c42 = arith.constant 42 : index
    %c0_162 = arith.constant 0 : index
    %416 = vector.load %arg1[%c42, %c0_162] : memref<72x128xf32, #tpu.memory_space<vmem>>, vector<1x128xf32>
    %417 = vector.broadcast %416 : vector<1x128xf32> to vector<16x128xf32>
    %418 = arith.mulf %415, %417 : vector<16x128xf32>
    %419 = arith.addf %407, %418 : vector<16x128xf32>
    %c43 = arith.constant 43 : index
    %c0_163 = arith.constant 0 : index
    %420 = vector.load %arg1[%c43, %c0_163] : memref<72x128xf32, #tpu.memory_space<vmem>>, vector<1x128xf32>
    %421 = vector.broadcast %420 : vector<1x128xf32> to vector<16x128xf32>
    %422 = arith.mulf %414, %421 : vector<16x128xf32>
    %423 = arith.addf %419, %422 : vector<16x128xf32>
    %c127_i32_164 = arith.constant 127 : i32
    %424 = tpu.dynamic_rotate %414 by %c127_i32_164 dim 1 : vector<16x128xf32>, i32 -> vector<16x128xf32>
    %c44 = arith.constant 44 : index
    %c0_165 = arith.constant 0 : index
    %425 = vector.load %arg1[%c44, %c0_165] : memref<72x128xf32, #tpu.memory_space<vmem>>, vector<1x128xf32>
    %426 = vector.broadcast %425 : vector<1x128xf32> to vector<16x128xf32>
    %427 = arith.mulf %424, %426 : vector<16x128xf32>
    %428 = arith.addf %423, %427 : vector<16x128xf32>
    %c112_i32_166 = arith.constant 112 : i32
    %429 = tpu.dynamic_rotate %367 by %c112_i32_166 dim 1 : vector<16x128xf32>, i32 -> vector<16x128xf32>
    %c16_i32_167 = arith.constant 16 : i32
    %430 = tpu.dynamic_rotate %367 by %c16_i32_167 dim 1 : vector<16x128xf32>, i32 -> vector<16x128xf32>
    %c32_i32_168 = arith.constant 32 : i32
    %431 = tpu.dynamic_rotate %367 by %c32_i32_168 dim 1 : vector<16x128xf32>, i32 -> vector<16x128xf32>
    %432 = arith.select %17, %430, %431 : vector<16x128xi1>, vector<16x128xf32>
    %433 = arith.select %15, %367, %432 : vector<16x128xi1>, vector<16x128xf32>
    %434 = arith.select %13, %429, %433 : vector<16x128xi1>, vector<16x128xf32>
    %c1_i32_169 = arith.constant 1 : i32
    %435 = tpu.dynamic_rotate %434 by %c1_i32_169 dim 0 : vector<16x128xf32>, i32 -> vector<16x128xf32>
    %c1_i32_170 = arith.constant 1 : i32
    %436 = vector.broadcast %c1_i32_170 : i32 to vector<16x1xi32>
    %437 = arith.cmpi slt, %18, %436 : vector<16x1xi32>
    %cst_171 = arith.constant 0.000000e+00 : f32
    %438 = vector.shape_cast %437 : vector<16x1xi1> to vector<16x1xi1>
    %439 = vector.broadcast %438 : vector<16x1xi1> to vector<16x128xi1>
    %440 = vector.broadcast %cst_171 : f32 to vector<16x128xf32>
    %441 = arith.select %439, %440, %435 : vector<16x128xi1>, vector<16x128xf32>
    %c1_i32_172 = arith.constant 1 : i32
    %442 = tpu.dynamic_rotate %441 by %c1_i32_172 dim 1 : vector<16x128xf32>, i32 -> vector<16x128xf32>
    %c45 = arith.constant 45 : index
    %c0_173 = arith.constant 0 : index
    %443 = vector.load %arg1[%c45, %c0_173] : memref<72x128xf32, #tpu.memory_space<vmem>>, vector<1x128xf32>
    %444 = vector.broadcast %443 : vector<1x128xf32> to vector<16x128xf32>
    %445 = arith.mulf %442, %444 : vector<16x128xf32>
    %c46 = arith.constant 46 : index
    %c0_174 = arith.constant 0 : index
    %446 = vector.load %arg1[%c46, %c0_174] : memref<72x128xf32, #tpu.memory_space<vmem>>, vector<1x128xf32>
    %447 = vector.broadcast %446 : vector<1x128xf32> to vector<16x128xf32>
    %448 = arith.mulf %441, %447 : vector<16x128xf32>
    %449 = arith.addf %445, %448 : vector<16x128xf32>
    %c127_i32_175 = arith.constant 127 : i32
    %450 = tpu.dynamic_rotate %441 by %c127_i32_175 dim 1 : vector<16x128xf32>, i32 -> vector<16x128xf32>
    %c47 = arith.constant 47 : index
    %c0_176 = arith.constant 0 : index
    %451 = vector.load %arg1[%c47, %c0_176] : memref<72x128xf32, #tpu.memory_space<vmem>>, vector<1x128xf32>
    %452 = vector.broadcast %451 : vector<1x128xf32> to vector<16x128xf32>
    %453 = arith.mulf %450, %452 : vector<16x128xf32>
    %454 = arith.addf %449, %453 : vector<16x128xf32>
    %c1_i32_177 = arith.constant 1 : i32
    %455 = tpu.dynamic_rotate %434 by %c1_i32_177 dim 1 : vector<16x128xf32>, i32 -> vector<16x128xf32>
    %c48 = arith.constant 48 : index
    %c0_178 = arith.constant 0 : index
    %456 = vector.load %arg1[%c48, %c0_178] : memref<72x128xf32, #tpu.memory_space<vmem>>, vector<1x128xf32>
    %457 = vector.broadcast %456 : vector<1x128xf32> to vector<16x128xf32>
    %458 = arith.mulf %455, %457 : vector<16x128xf32>
    %459 = arith.addf %454, %458 : vector<16x128xf32>
    %c49 = arith.constant 49 : index
    %c0_179 = arith.constant 0 : index
    %460 = vector.load %arg1[%c49, %c0_179] : memref<72x128xf32, #tpu.memory_space<vmem>>, vector<1x128xf32>
    %461 = vector.broadcast %460 : vector<1x128xf32> to vector<16x128xf32>
    %462 = arith.mulf %434, %461 : vector<16x128xf32>
    %463 = arith.addf %459, %462 : vector<16x128xf32>
    %c127_i32_180 = arith.constant 127 : i32
    %464 = tpu.dynamic_rotate %434 by %c127_i32_180 dim 1 : vector<16x128xf32>, i32 -> vector<16x128xf32>
    %c50 = arith.constant 50 : index
    %c0_181 = arith.constant 0 : index
    %465 = vector.load %arg1[%c50, %c0_181] : memref<72x128xf32, #tpu.memory_space<vmem>>, vector<1x128xf32>
    %466 = vector.broadcast %465 : vector<1x128xf32> to vector<16x128xf32>
    %467 = arith.mulf %464, %466 : vector<16x128xf32>
    %468 = arith.addf %463, %467 : vector<16x128xf32>
    %c15_i32_182 = arith.constant 15 : i32
    %469 = tpu.dynamic_rotate %434 by %c15_i32_182 dim 0 : vector<16x128xf32>, i32 -> vector<16x128xf32>
    %c15_i32_183 = arith.constant 15 : i32
    %470 = vector.broadcast %c15_i32_183 : i32 to vector<16x1xi32>
    %471 = arith.cmpi sge, %18, %470 : vector<16x1xi32>
    %cst_184 = arith.constant 0.000000e+00 : f32
    %472 = vector.shape_cast %471 : vector<16x1xi1> to vector<16x1xi1>
    %473 = vector.broadcast %472 : vector<16x1xi1> to vector<16x128xi1>
    %474 = vector.broadcast %cst_184 : f32 to vector<16x128xf32>
    %475 = arith.select %473, %474, %469 : vector<16x128xi1>, vector<16x128xf32>
    %c1_i32_185 = arith.constant 1 : i32
    %476 = tpu.dynamic_rotate %475 by %c1_i32_185 dim 1 : vector<16x128xf32>, i32 -> vector<16x128xf32>
    %c51 = arith.constant 51 : index
    %c0_186 = arith.constant 0 : index
    %477 = vector.load %arg1[%c51, %c0_186] : memref<72x128xf32, #tpu.memory_space<vmem>>, vector<1x128xf32>
    %478 = vector.broadcast %477 : vector<1x128xf32> to vector<16x128xf32>
    %479 = arith.mulf %476, %478 : vector<16x128xf32>
    %480 = arith.addf %468, %479 : vector<16x128xf32>
    %c52 = arith.constant 52 : index
    %c0_187 = arith.constant 0 : index
    %481 = vector.load %arg1[%c52, %c0_187] : memref<72x128xf32, #tpu.memory_space<vmem>>, vector<1x128xf32>
    %482 = vector.broadcast %481 : vector<1x128xf32> to vector<16x128xf32>
    %483 = arith.mulf %475, %482 : vector<16x128xf32>
    %484 = arith.addf %480, %483 : vector<16x128xf32>
    %c127_i32_188 = arith.constant 127 : i32
    %485 = tpu.dynamic_rotate %475 by %c127_i32_188 dim 1 : vector<16x128xf32>, i32 -> vector<16x128xf32>
    %c53 = arith.constant 53 : index
    %c0_189 = arith.constant 0 : index
    %486 = vector.load %arg1[%c53, %c0_189] : memref<72x128xf32, #tpu.memory_space<vmem>>, vector<1x128xf32>
    %487 = vector.broadcast %486 : vector<1x128xf32> to vector<16x128xf32>
    %488 = arith.mulf %485, %487 : vector<16x128xf32>
    %489 = arith.addf %484, %488 : vector<16x128xf32>
    %c96_i32_190 = arith.constant 96 : i32
    %490 = tpu.dynamic_rotate %367 by %c96_i32_190 dim 1 : vector<16x128xf32>, i32 -> vector<16x128xf32>
    %c112_i32_191 = arith.constant 112 : i32
    %491 = tpu.dynamic_rotate %367 by %c112_i32_191 dim 1 : vector<16x128xf32>, i32 -> vector<16x128xf32>
    %c16_i32_192 = arith.constant 16 : i32
    %492 = tpu.dynamic_rotate %367 by %c16_i32_192 dim 1 : vector<16x128xf32>, i32 -> vector<16x128xf32>
    %493 = arith.select %17, %367, %492 : vector<16x128xi1>, vector<16x128xf32>
    %494 = arith.select %15, %491, %493 : vector<16x128xi1>, vector<16x128xf32>
    %495 = arith.select %13, %490, %494 : vector<16x128xi1>, vector<16x128xf32>
    %c1_i32_193 = arith.constant 1 : i32
    %496 = tpu.dynamic_rotate %495 by %c1_i32_193 dim 0 : vector<16x128xf32>, i32 -> vector<16x128xf32>
    %c1_i32_194 = arith.constant 1 : i32
    %497 = vector.broadcast %c1_i32_194 : i32 to vector<16x1xi32>
    %498 = arith.cmpi slt, %18, %497 : vector<16x1xi32>
    %cst_195 = arith.constant 0.000000e+00 : f32
    %499 = vector.shape_cast %498 : vector<16x1xi1> to vector<16x1xi1>
    %500 = vector.broadcast %499 : vector<16x1xi1> to vector<16x128xi1>
    %501 = vector.broadcast %cst_195 : f32 to vector<16x128xf32>
    %502 = arith.select %500, %501, %496 : vector<16x128xi1>, vector<16x128xf32>
    %c1_i32_196 = arith.constant 1 : i32
    %503 = tpu.dynamic_rotate %502 by %c1_i32_196 dim 1 : vector<16x128xf32>, i32 -> vector<16x128xf32>
    %c54 = arith.constant 54 : index
    %c0_197 = arith.constant 0 : index
    %504 = vector.load %arg1[%c54, %c0_197] : memref<72x128xf32, #tpu.memory_space<vmem>>, vector<1x128xf32>
    %505 = vector.broadcast %504 : vector<1x128xf32> to vector<16x128xf32>
    %506 = arith.mulf %503, %505 : vector<16x128xf32>
    %c55 = arith.constant 55 : index
    %c0_198 = arith.constant 0 : index
    %507 = vector.load %arg1[%c55, %c0_198] : memref<72x128xf32, #tpu.memory_space<vmem>>, vector<1x128xf32>
    %508 = vector.broadcast %507 : vector<1x128xf32> to vector<16x128xf32>
    %509 = arith.mulf %502, %508 : vector<16x128xf32>
    %510 = arith.addf %506, %509 : vector<16x128xf32>
    %c127_i32_199 = arith.constant 127 : i32
    %511 = tpu.dynamic_rotate %502 by %c127_i32_199 dim 1 : vector<16x128xf32>, i32 -> vector<16x128xf32>
    %c56 = arith.constant 56 : index
    %c0_200 = arith.constant 0 : index
    %512 = vector.load %arg1[%c56, %c0_200] : memref<72x128xf32, #tpu.memory_space<vmem>>, vector<1x128xf32>
    %513 = vector.broadcast %512 : vector<1x128xf32> to vector<16x128xf32>
    %514 = arith.mulf %511, %513 : vector<16x128xf32>
    %515 = arith.addf %510, %514 : vector<16x128xf32>
    %c1_i32_201 = arith.constant 1 : i32
    %516 = tpu.dynamic_rotate %495 by %c1_i32_201 dim 1 : vector<16x128xf32>, i32 -> vector<16x128xf32>
    %c57 = arith.constant 57 : index
    %c0_202 = arith.constant 0 : index
    %517 = vector.load %arg1[%c57, %c0_202] : memref<72x128xf32, #tpu.memory_space<vmem>>, vector<1x128xf32>
    %518 = vector.broadcast %517 : vector<1x128xf32> to vector<16x128xf32>
    %519 = arith.mulf %516, %518 : vector<16x128xf32>
    %520 = arith.addf %515, %519 : vector<16x128xf32>
    %c58 = arith.constant 58 : index
    %c0_203 = arith.constant 0 : index
    %521 = vector.load %arg1[%c58, %c0_203] : memref<72x128xf32, #tpu.memory_space<vmem>>, vector<1x128xf32>
    %522 = vector.broadcast %521 : vector<1x128xf32> to vector<16x128xf32>
    %523 = arith.mulf %495, %522 : vector<16x128xf32>
    %524 = arith.addf %520, %523 : vector<16x128xf32>
    %c127_i32_204 = arith.constant 127 : i32
    %525 = tpu.dynamic_rotate %495 by %c127_i32_204 dim 1 : vector<16x128xf32>, i32 -> vector<16x128xf32>
    %c59 = arith.constant 59 : index
    %c0_205 = arith.constant 0 : index
    %526 = vector.load %arg1[%c59, %c0_205] : memref<72x128xf32, #tpu.memory_space<vmem>>, vector<1x128xf32>
    %527 = vector.broadcast %526 : vector<1x128xf32> to vector<16x128xf32>
    %528 = arith.mulf %525, %527 : vector<16x128xf32>
    %529 = arith.addf %524, %528 : vector<16x128xf32>
    %c15_i32_206 = arith.constant 15 : i32
    %530 = tpu.dynamic_rotate %495 by %c15_i32_206 dim 0 : vector<16x128xf32>, i32 -> vector<16x128xf32>
    %c15_i32_207 = arith.constant 15 : i32
    %531 = vector.broadcast %c15_i32_207 : i32 to vector<16x1xi32>
    %532 = arith.cmpi sge, %18, %531 : vector<16x1xi32>
    %cst_208 = arith.constant 0.000000e+00 : f32
    %533 = vector.shape_cast %532 : vector<16x1xi1> to vector<16x1xi1>
    %534 = vector.broadcast %533 : vector<16x1xi1> to vector<16x128xi1>
    %535 = vector.broadcast %cst_208 : f32 to vector<16x128xf32>
    %536 = arith.select %534, %535, %530 : vector<16x128xi1>, vector<16x128xf32>
    %c1_i32_209 = arith.constant 1 : i32
    %537 = tpu.dynamic_rotate %536 by %c1_i32_209 dim 1 : vector<16x128xf32>, i32 -> vector<16x128xf32>
    %c60 = arith.constant 60 : index
    %c0_210 = arith.constant 0 : index
    %538 = vector.load %arg1[%c60, %c0_210] : memref<72x128xf32, #tpu.memory_space<vmem>>, vector<1x128xf32>
    %539 = vector.broadcast %538 : vector<1x128xf32> to vector<16x128xf32>
    %540 = arith.mulf %537, %539 : vector<16x128xf32>
    %541 = arith.addf %529, %540 : vector<16x128xf32>
    %c61 = arith.constant 61 : index
    %c0_211 = arith.constant 0 : index
    %542 = vector.load %arg1[%c61, %c0_211] : memref<72x128xf32, #tpu.memory_space<vmem>>, vector<1x128xf32>
    %543 = vector.broadcast %542 : vector<1x128xf32> to vector<16x128xf32>
    %544 = arith.mulf %536, %543 : vector<16x128xf32>
    %545 = arith.addf %541, %544 : vector<16x128xf32>
    %c127_i32_212 = arith.constant 127 : i32
    %546 = tpu.dynamic_rotate %536 by %c127_i32_212 dim 1 : vector<16x128xf32>, i32 -> vector<16x128xf32>
    %c62 = arith.constant 62 : index
    %c0_213 = arith.constant 0 : index
    %547 = vector.load %arg1[%c62, %c0_213] : memref<72x128xf32, #tpu.memory_space<vmem>>, vector<1x128xf32>
    %548 = vector.broadcast %547 : vector<1x128xf32> to vector<16x128xf32>
    %549 = arith.mulf %546, %548 : vector<16x128xf32>
    %550 = arith.addf %545, %549 : vector<16x128xf32>
    %c80_i32_214 = arith.constant 80 : i32
    %551 = tpu.dynamic_rotate %367 by %c80_i32_214 dim 1 : vector<16x128xf32>, i32 -> vector<16x128xf32>
    %c96_i32_215 = arith.constant 96 : i32
    %552 = tpu.dynamic_rotate %367 by %c96_i32_215 dim 1 : vector<16x128xf32>, i32 -> vector<16x128xf32>
    %c112_i32_216 = arith.constant 112 : i32
    %553 = tpu.dynamic_rotate %367 by %c112_i32_216 dim 1 : vector<16x128xf32>, i32 -> vector<16x128xf32>
    %554 = arith.select %17, %553, %367 : vector<16x128xi1>, vector<16x128xf32>
    %555 = arith.select %15, %552, %554 : vector<16x128xi1>, vector<16x128xf32>
    %556 = arith.select %13, %551, %555 : vector<16x128xi1>, vector<16x128xf32>
    %c1_i32_217 = arith.constant 1 : i32
    %557 = tpu.dynamic_rotate %556 by %c1_i32_217 dim 0 : vector<16x128xf32>, i32 -> vector<16x128xf32>
    %c1_i32_218 = arith.constant 1 : i32
    %558 = vector.broadcast %c1_i32_218 : i32 to vector<16x1xi32>
    %559 = arith.cmpi slt, %18, %558 : vector<16x1xi32>
    %cst_219 = arith.constant 0.000000e+00 : f32
    %560 = vector.shape_cast %559 : vector<16x1xi1> to vector<16x1xi1>
    %561 = vector.broadcast %560 : vector<16x1xi1> to vector<16x128xi1>
    %562 = vector.broadcast %cst_219 : f32 to vector<16x128xf32>
    %563 = arith.select %561, %562, %557 : vector<16x128xi1>, vector<16x128xf32>
    %c1_i32_220 = arith.constant 1 : i32
    %564 = tpu.dynamic_rotate %563 by %c1_i32_220 dim 1 : vector<16x128xf32>, i32 -> vector<16x128xf32>
    %c63 = arith.constant 63 : index
    %c0_221 = arith.constant 0 : index
    %565 = vector.load %arg1[%c63, %c0_221] : memref<72x128xf32, #tpu.memory_space<vmem>>, vector<1x128xf32>
    %566 = vector.broadcast %565 : vector<1x128xf32> to vector<16x128xf32>
    %567 = arith.mulf %564, %566 : vector<16x128xf32>
    %c64 = arith.constant 64 : index
    %c0_222 = arith.constant 0 : index
    %568 = vector.load %arg1[%c64, %c0_222] : memref<72x128xf32, #tpu.memory_space<vmem>>, vector<1x128xf32>
    %569 = vector.broadcast %568 : vector<1x128xf32> to vector<16x128xf32>
    %570 = arith.mulf %563, %569 : vector<16x128xf32>
    %571 = arith.addf %567, %570 : vector<16x128xf32>
    %c127_i32_223 = arith.constant 127 : i32
    %572 = tpu.dynamic_rotate %563 by %c127_i32_223 dim 1 : vector<16x128xf32>, i32 -> vector<16x128xf32>
    %c65 = arith.constant 65 : index
    %c0_224 = arith.constant 0 : index
    %573 = vector.load %arg1[%c65, %c0_224] : memref<72x128xf32, #tpu.memory_space<vmem>>, vector<1x128xf32>
    %574 = vector.broadcast %573 : vector<1x128xf32> to vector<16x128xf32>
    %575 = arith.mulf %572, %574 : vector<16x128xf32>
    %576 = arith.addf %571, %575 : vector<16x128xf32>
    %c1_i32_225 = arith.constant 1 : i32
    %577 = tpu.dynamic_rotate %556 by %c1_i32_225 dim 1 : vector<16x128xf32>, i32 -> vector<16x128xf32>
    %c66 = arith.constant 66 : index
    %c0_226 = arith.constant 0 : index
    %578 = vector.load %arg1[%c66, %c0_226] : memref<72x128xf32, #tpu.memory_space<vmem>>, vector<1x128xf32>
    %579 = vector.broadcast %578 : vector<1x128xf32> to vector<16x128xf32>
    %580 = arith.mulf %577, %579 : vector<16x128xf32>
    %581 = arith.addf %576, %580 : vector<16x128xf32>
    %c67 = arith.constant 67 : index
    %c0_227 = arith.constant 0 : index
    %582 = vector.load %arg1[%c67, %c0_227] : memref<72x128xf32, #tpu.memory_space<vmem>>, vector<1x128xf32>
    %583 = vector.broadcast %582 : vector<1x128xf32> to vector<16x128xf32>
    %584 = arith.mulf %556, %583 : vector<16x128xf32>
    %585 = arith.addf %581, %584 : vector<16x128xf32>
    %c127_i32_228 = arith.constant 127 : i32
    %586 = tpu.dynamic_rotate %556 by %c127_i32_228 dim 1 : vector<16x128xf32>, i32 -> vector<16x128xf32>
    %c68 = arith.constant 68 : index
    %c0_229 = arith.constant 0 : index
    %587 = vector.load %arg1[%c68, %c0_229] : memref<72x128xf32, #tpu.memory_space<vmem>>, vector<1x128xf32>
    %588 = vector.broadcast %587 : vector<1x128xf32> to vector<16x128xf32>
    %589 = arith.mulf %586, %588 : vector<16x128xf32>
    %590 = arith.addf %585, %589 : vector<16x128xf32>
    %c15_i32_230 = arith.constant 15 : i32
    %591 = tpu.dynamic_rotate %556 by %c15_i32_230 dim 0 : vector<16x128xf32>, i32 -> vector<16x128xf32>
    %c15_i32_231 = arith.constant 15 : i32
    %592 = vector.broadcast %c15_i32_231 : i32 to vector<16x1xi32>
    %593 = arith.cmpi sge, %18, %592 : vector<16x1xi32>
    %cst_232 = arith.constant 0.000000e+00 : f32
    %594 = vector.shape_cast %593 : vector<16x1xi1> to vector<16x1xi1>
    %595 = vector.broadcast %594 : vector<16x1xi1> to vector<16x128xi1>
    %596 = vector.broadcast %cst_232 : f32 to vector<16x128xf32>
    %597 = arith.select %595, %596, %591 : vector<16x128xi1>, vector<16x128xf32>
    %c1_i32_233 = arith.constant 1 : i32
    %598 = tpu.dynamic_rotate %597 by %c1_i32_233 dim 1 : vector<16x128xf32>, i32 -> vector<16x128xf32>
    %c69 = arith.constant 69 : index
    %c0_234 = arith.constant 0 : index
    %599 = vector.load %arg1[%c69, %c0_234] : memref<72x128xf32, #tpu.memory_space<vmem>>, vector<1x128xf32>
    %600 = vector.broadcast %599 : vector<1x128xf32> to vector<16x128xf32>
    %601 = arith.mulf %598, %600 : vector<16x128xf32>
    %602 = arith.addf %590, %601 : vector<16x128xf32>
    %c70 = arith.constant 70 : index
    %c0_235 = arith.constant 0 : index
    %603 = vector.load %arg1[%c70, %c0_235] : memref<72x128xf32, #tpu.memory_space<vmem>>, vector<1x128xf32>
    %604 = vector.broadcast %603 : vector<1x128xf32> to vector<16x128xf32>
    %605 = arith.mulf %597, %604 : vector<16x128xf32>
    %606 = arith.addf %602, %605 : vector<16x128xf32>
    %c127_i32_236 = arith.constant 127 : i32
    %607 = tpu.dynamic_rotate %597 by %c127_i32_236 dim 1 : vector<16x128xf32>, i32 -> vector<16x128xf32>
    %c71 = arith.constant 71 : index
    %c0_237 = arith.constant 0 : index
    %608 = vector.load %arg1[%c71, %c0_237] : memref<72x128xf32, #tpu.memory_space<vmem>>, vector<1x128xf32>
    %609 = vector.broadcast %608 : vector<1x128xf32> to vector<16x128xf32>
    %610 = arith.mulf %607, %609 : vector<16x128xf32>
    %611 = arith.addf %606, %610 : vector<16x128xf32>
    %612 = arith.addf %428, %489 : vector<16x128xf32>
    %613 = arith.addf %550, %611 : vector<16x128xf32>
    %614 = arith.addf %612, %613 : vector<16x128xf32>
    %615 = vector.broadcast %20 : vector<1x128xf32> to vector<16x128xf32>
    %616 = arith.addf %614, %615 : vector<16x128xf32>
    %cst_238 = arith.constant dense<0.000000e+00> : vector<128xf32>
    %617 = vector.multi_reduction <add>, %616, %cst_238 [0] : vector<16x128xf32> to vector<128xf32>
    %618 = vector.shape_cast %617 : vector<128xf32> to vector<1x128xf32>
    %619 = arith.mulf %616, %616 : vector<16x128xf32>
    %cst_239 = arith.constant dense<0.000000e+00> : vector<128xf32>
    %620 = vector.multi_reduction <add>, %619, %cst_239 [0] : vector<16x128xf32> to vector<128xf32>
    %621 = vector.shape_cast %620 : vector<128xf32> to vector<1x128xf32>
    %cst_240 = arith.constant 0.000000e+00 : f32
    %622 = vector.broadcast %cst_240 : f32 to vector<1x128xf32>
    %cst_241 = arith.constant 0.000000e+00 : f32
    %623 = vector.broadcast %cst_241 : f32 to vector<1x128xf32>
    %cst_242 = arith.constant 0.000000e+00 : f32
    %624 = vector.broadcast %cst_242 : f32 to vector<1x128xf32>
    %625 = arith.select %2, %618, %624 : vector<1x128xi1>, vector<1x128xf32>
    %cst_243 = arith.constant dense<0.000000e+00> : vector<1xf32>
    %626 = vector.multi_reduction <add>, %625, %cst_243 [1] : vector<1x128xf32> to vector<1xf32>
    %627 = vector.shape_cast %626 : vector<1xf32> to vector<1x1xf32>
    %cst_244 = arith.constant 0.001953125 : f32
    %628 = vector.broadcast %cst_244 : f32 to vector<1x1xf32>
    %629 = arith.mulf %627, %628 : vector<1x1xf32>
    %cst_245 = arith.constant 0.000000e+00 : f32
    %630 = vector.broadcast %cst_245 : f32 to vector<1x128xf32>
    %631 = arith.select %2, %621, %630 : vector<1x128xi1>, vector<1x128xf32>
    %cst_246 = arith.constant dense<0.000000e+00> : vector<1xf32>
    %632 = vector.multi_reduction <add>, %631, %cst_246 [1] : vector<1x128xf32> to vector<1xf32>
    %633 = vector.shape_cast %632 : vector<1xf32> to vector<1x1xf32>
    %cst_247 = arith.constant 0.001953125 : f32
    %634 = vector.broadcast %cst_247 : f32 to vector<1x1xf32>
    %635 = arith.mulf %633, %634 : vector<1x1xf32>
    %636 = vector.shape_cast %629 : vector<1x1xf32> to vector<1x1xf32>
    %637 = vector.broadcast %636 : vector<1x1xf32> to vector<1x128xf32>
    %638 = arith.select %2, %637, %622 : vector<1x128xi1>, vector<1x128xf32>
    %639 = vector.shape_cast %635 : vector<1x1xf32> to vector<1x1xf32>
    %640 = vector.broadcast %639 : vector<1x1xf32> to vector<1x128xf32>
    %641 = arith.select %2, %640, %623 : vector<1x128xi1>, vector<1x128xf32>
    %cst_248 = arith.constant 0.000000e+00 : f32
    %642 = vector.broadcast %cst_248 : f32 to vector<1x128xf32>
    %643 = arith.select %5, %618, %642 : vector<1x128xi1>, vector<1x128xf32>
    %cst_249 = arith.constant dense<0.000000e+00> : vector<1xf32>
    %644 = vector.multi_reduction <add>, %643, %cst_249 [1] : vector<1x128xf32> to vector<1xf32>
    %645 = vector.shape_cast %644 : vector<1xf32> to vector<1x1xf32>
    %cst_250 = arith.constant 0.001953125 : f32
    %646 = vector.broadcast %cst_250 : f32 to vector<1x1xf32>
    %647 = arith.mulf %645, %646 : vector<1x1xf32>
    %cst_251 = arith.constant 0.000000e+00 : f32
    %648 = vector.broadcast %cst_251 : f32 to vector<1x128xf32>
    %649 = arith.select %5, %621, %648 : vector<1x128xi1>, vector<1x128xf32>
    %cst_252 = arith.constant dense<0.000000e+00> : vector<1xf32>
    %650 = vector.multi_reduction <add>, %649, %cst_252 [1] : vector<1x128xf32> to vector<1xf32>
    %651 = vector.shape_cast %650 : vector<1xf32> to vector<1x1xf32>
    %cst_253 = arith.constant 0.001953125 : f32
    %652 = vector.broadcast %cst_253 : f32 to vector<1x1xf32>
    %653 = arith.mulf %651, %652 : vector<1x1xf32>
    %654 = vector.shape_cast %647 : vector<1x1xf32> to vector<1x1xf32>
    %655 = vector.broadcast %654 : vector<1x1xf32> to vector<1x128xf32>
    %656 = arith.select %5, %655, %638 : vector<1x128xi1>, vector<1x128xf32>
    %657 = vector.shape_cast %653 : vector<1x1xf32> to vector<1x1xf32>
    %658 = vector.broadcast %657 : vector<1x1xf32> to vector<1x128xf32>
    %659 = arith.select %5, %658, %641 : vector<1x128xi1>, vector<1x128xf32>
    %cst_254 = arith.constant 0.000000e+00 : f32
    %660 = vector.broadcast %cst_254 : f32 to vector<1x128xf32>
    %661 = arith.select %8, %618, %660 : vector<1x128xi1>, vector<1x128xf32>
    %cst_255 = arith.constant dense<0.000000e+00> : vector<1xf32>
    %662 = vector.multi_reduction <add>, %661, %cst_255 [1] : vector<1x128xf32> to vector<1xf32>
    %663 = vector.shape_cast %662 : vector<1xf32> to vector<1x1xf32>
    %cst_256 = arith.constant 0.001953125 : f32
    %664 = vector.broadcast %cst_256 : f32 to vector<1x1xf32>
    %665 = arith.mulf %663, %664 : vector<1x1xf32>
    %cst_257 = arith.constant 0.000000e+00 : f32
    %666 = vector.broadcast %cst_257 : f32 to vector<1x128xf32>
    %667 = arith.select %8, %621, %666 : vector<1x128xi1>, vector<1x128xf32>
    %cst_258 = arith.constant dense<0.000000e+00> : vector<1xf32>
    %668 = vector.multi_reduction <add>, %667, %cst_258 [1] : vector<1x128xf32> to vector<1xf32>
    %669 = vector.shape_cast %668 : vector<1xf32> to vector<1x1xf32>
    %cst_259 = arith.constant 0.001953125 : f32
    %670 = vector.broadcast %cst_259 : f32 to vector<1x1xf32>
    %671 = arith.mulf %669, %670 : vector<1x1xf32>
    %672 = vector.shape_cast %665 : vector<1x1xf32> to vector<1x1xf32>
    %673 = vector.broadcast %672 : vector<1x1xf32> to vector<1x128xf32>
    %674 = arith.select %8, %673, %656 : vector<1x128xi1>, vector<1x128xf32>
    %675 = vector.shape_cast %671 : vector<1x1xf32> to vector<1x1xf32>
    %676 = vector.broadcast %675 : vector<1x1xf32> to vector<1x128xf32>
    %677 = arith.select %8, %676, %659 : vector<1x128xi1>, vector<1x128xf32>
    %cst_260 = arith.constant 0.000000e+00 : f32
    %678 = vector.broadcast %cst_260 : f32 to vector<1x128xf32>
    %679 = arith.select %11, %618, %678 : vector<1x128xi1>, vector<1x128xf32>
    %cst_261 = arith.constant dense<0.000000e+00> : vector<1xf32>
    %680 = vector.multi_reduction <add>, %679, %cst_261 [1] : vector<1x128xf32> to vector<1xf32>
    %681 = vector.shape_cast %680 : vector<1xf32> to vector<1x1xf32>
    %cst_262 = arith.constant 0.001953125 : f32
    %682 = vector.broadcast %cst_262 : f32 to vector<1x1xf32>
    %683 = arith.mulf %681, %682 : vector<1x1xf32>
    %cst_263 = arith.constant 0.000000e+00 : f32
    %684 = vector.broadcast %cst_263 : f32 to vector<1x128xf32>
    %685 = arith.select %11, %621, %684 : vector<1x128xi1>, vector<1x128xf32>
    %cst_264 = arith.constant dense<0.000000e+00> : vector<1xf32>
    %686 = vector.multi_reduction <add>, %685, %cst_264 [1] : vector<1x128xf32> to vector<1xf32>
    %687 = vector.shape_cast %686 : vector<1xf32> to vector<1x1xf32>
    %cst_265 = arith.constant 0.001953125 : f32
    %688 = vector.broadcast %cst_265 : f32 to vector<1x1xf32>
    %689 = arith.mulf %687, %688 : vector<1x1xf32>
    %690 = vector.shape_cast %683 : vector<1x1xf32> to vector<1x1xf32>
    %691 = vector.broadcast %690 : vector<1x1xf32> to vector<1x128xf32>
    %692 = arith.select %11, %691, %674 : vector<1x128xi1>, vector<1x128xf32>
    %693 = vector.shape_cast %689 : vector<1x1xf32> to vector<1x1xf32>
    %694 = vector.broadcast %693 : vector<1x1xf32> to vector<1x128xf32>
    %695 = arith.select %11, %694, %677 : vector<1x128xi1>, vector<1x128xf32>
    %696 = arith.mulf %692, %692 : vector<1x128xf32>
    %697 = arith.subf %695, %696 : vector<1x128xf32>
    %cst_266 = arith.constant 9.99999974E-6 : f32
    %698 = vector.broadcast %cst_266 : f32 to vector<1x128xf32>
    %699 = arith.addf %697, %698 : vector<1x128xf32>
    %700 = math.rsqrt %699 : vector<1x128xf32>
    %701 = arith.mulf %700, %23 : vector<1x128xf32>
    %702 = vector.broadcast %692 : vector<1x128xf32> to vector<16x128xf32>
    %703 = arith.subf %616, %702 : vector<16x128xf32>
    %704 = vector.broadcast %701 : vector<1x128xf32> to vector<16x128xf32>
    %705 = arith.mulf %703, %704 : vector<16x128xf32>
    %706 = vector.broadcast %24 : vector<1x128xf32> to vector<16x128xf32>
    %707 = arith.addf %705, %706 : vector<16x128xf32>
    %708 = arith.addf %25, %707 : vector<16x128xf32>
    %cst_267 = arith.constant 0.000000e+00 : f32
    %709 = vector.broadcast %cst_267 : f32 to vector<16x128xf32>
    %710 = arith.maximumf %708, %709 : vector<16x128xf32>
    %c0_268 = arith.constant 0 : index
    %c0_269 = arith.constant 0 : index
    %711 = vector.load %arg3[%c0_268, %c0_269] : memref<16x128xf32, #tpu.memory_space<vmem>>, vector<16x128xf32>
    tpu.vector_store %arg3[%c0_268, %c0_269], %710 {strides = array<i32>} : memref<16x128xf32, #tpu.memory_space<vmem>>, vector<16x128xf32>,
    return
  }
}

</mosaic_0001>

<llo_original>
// kernel: resblock_forward.1
$region0: #{resblock_forward.1}
  #allocation0 [shape = 'u32[]', space=smem, size = 0x4, offset = 0x4, fixed_abs, tag = 'smem constant byte address 0x4 - core index']
  #allocation1 [shape = 'u32[72,128]{1,0:T(1,128)}', space=vmem, size = 0x9000, scoped, tag = 'internal scratch']
  %s0 = inlined_call_operand.vmem [shape: f32[16,128], index: 0, kind: input, shape index: {}]
  %s1 = inlined_call_operand.vmem [shape: f32[72,128], index: 1, kind: input, shape index: {}]
  %s2 = inlined_call_operand.vmem [shape: f32[10,128], index: 2, kind: input, shape index: {}]
  %s3 = inlined_call_operand.vmem [shape: f32[16,128], index: 3, kind: output, shape index: {}]
  %s4 = sld [smem:[#allocation0]]
  $region22: #{resblock_forward.1} parent=0
    _
  %s6 = ssub.s32 1, %s4
  %s7 = scalar_select 0, %s6, %s4
  // Predicated region
  $region2: #{resblock_forward.1} parent=0 // pred_check
    _
  $region3: #{resblock_forward.1} parent=0 // pred_check_branch
    %9 = sbr.rel (0) target = $region5
  $region4: #{resblock_forward.1} parent=0 // pred_region
    _
  $region5: #{resblock_forward.1} parent=0 // pred_fallthru
    _
  // Predicated region
  $region6: #{resblock_forward.1} parent=0 // pred_check
    _
  $region7: #{resblock_forward.1} parent=0 // pred_check_branch
    %11 = sbr.rel (0) target = $region9
  $region8: #{resblock_forward.1} parent=0 // pred_region
    _
  $region9: #{resblock_forward.1} parent=0 // pred_fallthru
    _
  // Predicated region
  $region10: #{resblock_forward.1} parent=0 // pred_check
    _
  $region11: #{resblock_forward.1} parent=0 // pred_check_branch
    %13 = sbr.rel (0) target = $region13
  $region12: #{resblock_forward.1} parent=0 // pred_region
    _
  $region13: #{resblock_forward.1} parent=0 // pred_fallthru
    _
  %v14 = vld [vmem:[%s2 + $0x6] sm:$0x1]
  %vm15 = vcmp.gt.f32.partialorder %v14, 0.5
  %v16 = vld [vmem:[%s2 + $0x7] sm:$0x1]
  %vm17 = vcmp.gt.f32.partialorder %v16, 0.5
  %v18 = vld [vmem:[%s2 + $0x8] sm:$0x1]
  %vm19 = vcmp.gt.f32.partialorder %v18, 0.5
  %v20 = vld [vmem:[%s2 + $0x9] sm:$0x1]
  %vm21 = vcmp.gt.f32.partialorder %v20, 0.5
  %v22 = vsel %vm15, 1, 0
  %v23 = vperm.slane %v22, 0
  %vm24 = vcmp.eq.s32.totalorder %v23, 1
  %v25 = vsel %vm17, 1, 0
  %v26 = vperm.slane %v25, 0
  %vm27 = vcmp.eq.s32.totalorder %v26, 1
  %v28 = vsel %vm19, 1, 0
  %v29 = vperm.slane %v28, 0
  %vm30 = vcmp.eq.s32.totalorder %v29, 1
  %v31 = vlaneseq
  %v32 = vshrl.u32 %v31, 7
  %v33 = vadd.s32 %v32, 8
  %v34 = vld [vmem:[%s2] sm:$0x1]
  %v35 = vld [vmem:[%s2 + $0x1] sm:$0x1]
  %v36 = vld [vmem:[%s2 + $0x2] sm:$0x1]
  %v37 = vld [vmem:[%s2 + $0x3] sm:$0x1]
  %v38 = vld [vmem:[%s2 + $0x4] sm:$0x1]
  %v39 = vld [vmem:[%s2 + $0x5] sm:$0x1]
  %v40 = vld [vmem:[%s0] sm:$0xff]
  %v41 = vld [vmem:[%s0 + $0x8] sm:$0xff]
  %42 = vrot.lane.b32.xlu0 %v40, 16
  %v43 = vpop.permute.xlu0 %42
  %44 = vrot.lane.b32.xlu0 %v41, 16
  %v45 = vpop.permute.xlu0 %44
  %46 = vrot.lane.b32.xlu0 %v40, 32
  %v47 = vpop.permute.xlu0 %46
  %48 = vrot.lane.b32.xlu0 %v41, 32
  %v49 = vpop.permute.xlu0 %48
  %50 = vrot.lane.b32.xlu0 %v40, 48
  %v51 = vpop.permute.xlu0 %50
  %52 = vrot.lane.b32.xlu0 %v41, 48
  %v53 = vpop.permute.xlu0 %52
  %v54 = vsel %vm30, %v47, %v51
  %v55 = vsel %vm30, %v49, %v53
  %v56 = vsel %vm27, %v43, %v54
  %v57 = vsel %vm27, %v45, %v55
  %v58 = vsel %vm24, %v40, %v56
  %v59 = vsel %vm24, %v41, %v57
  %v60 = vrot.slane %v58, 7
  %v61 = vrot.slane %v59, 7
  %vm62 = vcmp.lt.s32.totalorder %v32, 1
  %v63 = vsel %vm62, %v60, %v61
  %v64 = vsel %vm62, %v61, %v60
  %vm65 = vcmp.lt.s32.totalorder %v33, 1
  %v66 = vsel %vm62, 1, 0
  %v67 = vsel %vm65, 1, 0
  %vm68 = vcmp.eq.s32.totalorder %v66, 1
  %vm69 = vcmp.eq.s32.totalorder %v67, 1
  %v70 = vsel %vm68, 0.0, %v64
  %v71 = vsel %vm69, 0.0, %v63
  %72 = vrot.lane.b32.xlu0 %v70, 1
  %v73 = vpop.permute.xlu0 %72
  %74 = vrot.lane.b32.xlu0 %v71, 1
  %v75 = vpop.permute.xlu0 %74
  %v76 = vld [vmem:[%s1] sm:$0x1]
  %v77 = vperm.slane %v76, 0
  %v78 = vmul.f32 %v73, %v77
  %v79 = vmul.f32 %v75, %v77
  %v80 = vld [vmem:[%s1 + $0x1] sm:$0x1]
  %v81 = vperm.slane %v80, 0
  %v82 = vmul.f32 %v70, %v81
  %v83 = vmul.f32 %v71, %v81
  %v84 = vadd.f32 %v78, %v82
  %v85 = vadd.f32 %v79, %v83
  %86 = vrot.lane.b32.xlu0 %v70, 127
  %v87 = vpop.permute.xlu0 %86
  %88 = vrot.lane.b32.xlu0 %v71, 127
  %v89 = vpop.permute.xlu0 %88
  %v90 = vld [vmem:[%s1 + $0x2] sm:$0x1]
  %v91 = vperm.slane %v90, 0
  %v92 = vmul.f32 %v87, %v91
  %v93 = vmul.f32 %v89, %v91
  %v94 = vadd.f32 %v84, %v92
  %v95 = vadd.f32 %v85, %v93
  %96 = vrot.lane.b32.xlu0 %v58, 1
  %v97 = vpop.permute.xlu0 %96
  %98 = vrot.lane.b32.xlu0 %v59, 1
  %v99 = vpop.permute.xlu0 %98
  %v100 = vld [vmem:[%s1 + $0x3] sm:$0x1]
  %v101 = vperm.slane %v100, 0
  %v102 = vmul.f32 %v97, %v101
  %v103 = vmul.f32 %v99, %v101
  %v104 = vadd.f32 %v94, %v102
  %v105 = vadd.f32 %v95, %v103
  %v106 = vld [vmem:[%s1 + $0x4] sm:$0x1]
  %v107 = vperm.slane %v106, 0
  %v108 = vmul.f32 %v58, %v107
  %v109 = vmul.f32 %v59, %v107
  %v110 = vadd.f32 %v104, %v108
  %v111 = vadd.f32 %v105, %v109
  %112 = vrot.lane.b32.xlu0 %v58, 127
  %v113 = vpop.permute.xlu0 %112
  %114 = vrot.lane.b32.xlu0 %v59, 127
  %v115 = vpop.permute.xlu0 %114
  %v116 = vld [vmem:[%s1 + $0x5] sm:$0x1]
  %v117 = vperm.slane %v116, 0
  %v118 = vmul.f32 %v113, %v117
  %v119 = vmul.f32 %v115, %v117
  %v120 = vadd.f32 %v110, %v118
  %v121 = vadd.f32 %v111, %v119
  %v122 = vrot.slane %v58, 1
  %v123 = vrot.slane %v59, 1
  %vm124 = vcmp.lt.s32.totalorder %v32, 7
  %v125 = vsel %vm124, %v122, %v123
  %v126 = vsel %vm124, %v123, %v122
  %vm127 = vcmp.ge.s32.totalorder %v32, 15
  %vm128 = vcmp.ge.s32.totalorder %v33, 15
  %v129 = vsel %vm127, 1, 0
  %v130 = vsel %vm128, 1, 0
  %vm131 = vcmp.eq.s32.totalorder %v129, 1
  %vm132 = vcmp.eq.s32.totalorder %v130, 1
  %v133 = vsel %vm131, 0.0, %v125
  %v134 = vsel %vm132, 0.0, %v126
  %135 = vrot.lane.b32.xlu0 %v133, 1
  %v136 = vpop.permute.xlu0 %135
  %137 = vrot.lane.b32.xlu0 %v134, 1
  %v138 = vpop.permute.xlu0 %137
  %v139 = vld [vmem:[%s1 + $0x6] sm:$0x1]
  %v140 = vperm.slane %v139, 0
  %v141 = vmul.f32 %v136, %v140
  %v142 = vmul.f32 %v138, %v140
  %v143 = vadd.f32 %v120, %v141
  %v144 = vadd.f32 %v121, %v142
  %v145 = vld [vmem:[%s1 + $0x7] sm:$0x1]
  %v146 = vperm.slane %v145, 0
  %v147 = vmul.f32 %v133, %v146
  %v148 = vmul.f32 %v134, %v146
  %v149 = vadd.f32 %v143, %v147
  %v150 = vadd.f32 %v144, %v148
  %151 = vrot.lane.b32.xlu0 %v133, 127
  %v152 = vpop.permute.xlu0 %151
  %153 = vrot.lane.b32.xlu0 %v134, 127
  %v154 = vpop.permute.xlu0 %153
  %v155 = vld [vmem:[%s1 + $0x8] sm:$0x1]
  %v156 = vperm.slane %v155, 0
  %v157 = vmul.f32 %v152, %v156
  %v158 = vmul.f32 %v154, %v156
  %v159 = vadd.f32 %v149, %v157
  %v160 = vadd.f32 %v150, %v158
  %161 = vrot.lane.b32.xlu0 %v40, 112
  %v162 = vpop.permute.xlu0 %161
  %163 = vrot.lane.b32.xlu0 %v41, 112
  %v164 = vpop.permute.xlu0 %163
  %v165 = vsel %vm30, %v43, %v47
  %v166 = vsel %vm30, %v45, %v49
  %v167 = vsel %vm27, %v40, %v165
  %v168 = vsel %vm27, %v41, %v166
  %v169 = vsel %vm24, %v162, %v167
  %v170 = vsel %vm24, %v164, %v168
  %v171 = vrot.slane %v169, 7
  %v172 = vrot.slane %v170, 7
  %v173 = vsel %vm62, %v171, %v172
  %v174 = vsel %vm62, %v172, %v171
  %v175 = vsel %vm68, 0.0, %v174
  %v176 = vsel %vm69, 0.0, %v173
  %177 = vrot.lane.b32.xlu0 %v175, 1
  %v178 = vpop.permute.xlu0 %177
  %179 = vrot.lane.b32.xlu0 %v176, 1
  %v180 = vpop.permute.xlu0 %179
  %v181 = vld [vmem:[%s1 + $0x9] sm:$0x1]
  %v182 = vperm.slane %v181, 0
  %v183 = vmul.f32 %v178, %v182
  %v184 = vmul.f32 %v180, %v182
  %v185 = vld [vmem:[%s1 + $0xa] sm:$0x1]
  %v186 = vperm.slane %v185, 0
  %v187 = vmul.f32 %v175, %v186
  %v188 = vmul.f32 %v176, %v186
  %v189 = vadd.f32 %v183, %v187
  %v190 = vadd.f32 %v184, %v188
  %191 = vrot.lane.b32.xlu0 %v175, 127
  %v192 = vpop.permute.xlu0 %191
  %193 = vrot.lane.b32.xlu0 %v176, 127
  %v194 = vpop.permute.xlu0 %193
  %v195 = vld [vmem:[%s1 + $0xb] sm:$0x1]
  %v196 = vperm.slane %v195, 0
  %v197 = vmul.f32 %v192, %v196
  %v198 = vmul.f32 %v194, %v196
  %v199 = vadd.f32 %v189, %v197
  %v200 = vadd.f32 %v190, %v198
  %201 = vrot.lane.b32.xlu0 %v169, 1
  %v202 = vpop.permute.xlu0 %201
  %203 = vrot.lane.b32.xlu0 %v170, 1
  %v204 = vpop.permute.xlu0 %203
  %v205 = vld [vmem:[%s1 + $0xc] sm:$0x1]
  %v206 = vperm.slane %v205, 0
  %v207 = vmul.f32 %v202, %v206
  %v208 = vmul.f32 %v204, %v206
  %v209 = vadd.f32 %v199, %v207
  %v210 = vadd.f32 %v200, %v208
  %v211 = vld [vmem:[%s1 + $0xd] sm:$0x1]
  %v212 = vperm.slane %v211, 0
  %v213 = vmul.f32 %v169, %v212
  %v214 = vmul.f32 %v170, %v212
  %v215 = vadd.f32 %v209, %v213
  %v216 = vadd.f32 %v210, %v214
  %217 = vrot.lane.b32.xlu0 %v169, 127
  %v218 = vpop.permute.xlu0 %217
  %219 = vrot.lane.b32.xlu0 %v170, 127
  %v220 = vpop.permute.xlu0 %219
  %v221 = vld [vmem:[%s1 + $0xe] sm:$0x1]
  %v222 = vperm.slane %v221, 0
  %v223 = vmul.f32 %v218, %v222
  %v224 = vmul.f32 %v220, %v222
  %v225 = vadd.f32 %v215, %v223
  %v226 = vadd.f32 %v216, %v224
  %v227 = vrot.slane %v169, 1
  %v228 = vrot.slane %v170, 1
  %v229 = vsel %vm124, %v227, %v228
  %v230 = vsel %vm124, %v228, %v227
  %v231 = vsel %vm131, 0.0, %v229
  %v232 = vsel %vm132, 0.0, %v230
  %233 = vrot.lane.b32.xlu0 %v231, 1
  %v234 = vpop.permute.xlu0 %233
  %235 = vrot.lane.b32.xlu0 %v232, 1
  %v236 = vpop.permute.xlu0 %235
  %v237 = vld [vmem:[%s1 + $0xf] sm:$0x1]
  %v238 = vperm.slane %v237, 0
  %v239 = vmul.f32 %v234, %v238
  %v240 = vmul.f32 %v236, %v238
  %v241 = vadd.f32 %v225, %v239
  %v242 = vadd.f32 %v226, %v240
  %v243 = vld [vmem:[%s1 + $0x10] sm:$0x1]
  %v244 = vperm.slane %v243, 0
  %v245 = vmul.f32 %v231, %v244
  %v246 = vmul.f32 %v232, %v244
  %v247 = vadd.f32 %v241, %v245
  %v248 = vadd.f32 %v242, %v246
  %249 = vrot.lane.b32.xlu0 %v231, 127
  %v250 = vpop.permute.xlu0 %249
  %251 = vrot.lane.b32.xlu0 %v232, 127
  %v252 = vpop.permute.xlu0 %251
  %v253 = vld [vmem:[%s1 + $0x11] sm:$0x1]
  %v254 = vperm.slane %v253, 0
  %v255 = vmul.f32 %v250, %v254
  %v256 = vmul.f32 %v252, %v254
  %v257 = vadd.f32 %v247, %v255
  %v258 = vadd.f32 %v248, %v256
  %259 = vrot.lane.b32.xlu0 %v40, 96
  %v260 = vpop.permute.xlu0 %259
  %261 = vrot.lane.b32.xlu0 %v41, 96
  %v262 = vpop.permute.xlu0 %261
  %v263 = vsel %vm30, %v40, %v43
  %v264 = vsel %vm30, %v41, %v45
  %v265 = vsel %vm27, %v162, %v263
  %v266 = vsel %vm27, %v164, %v264
  %v267 = vsel %vm24, %v260, %v265
  %v268 = vsel %vm24, %v262, %v266
  %v269 = vrot.slane %v267, 7
  %v270 = vrot.slane %v268, 7
  %v271 = vsel %vm62, %v269, %v270
  %v272 = vsel %vm62, %v270, %v269
  %v273 = vsel %vm68, 0.0, %v272
  %v274 = vsel %vm69, 0.0, %v271
  %275 = vrot.lane.b32.xlu0 %v273, 1
  %v276 = vpop.permute.xlu0 %275
  %277 = vrot.lane.b32.xlu0 %v274, 1
  %v278 = vpop.permute.xlu0 %277
  %v279 = vld [vmem:[%s1 + $0x12] sm:$0x1]
  %v280 = vperm.slane %v279, 0
  %v281 = vmul.f32 %v276, %v280
  %v282 = vmul.f32 %v278, %v280
  %v283 = vld [vmem:[%s1 + $0x13] sm:$0x1]
  %v284 = vperm.slane %v283, 0
  %v285 = vmul.f32 %v273, %v284
  %v286 = vmul.f32 %v274, %v284
  %v287 = vadd.f32 %v281, %v285
  %v288 = vadd.f32 %v282, %v286
  %289 = vrot.lane.b32.xlu0 %v273, 127
  %v290 = vpop.permute.xlu0 %289
  %291 = vrot.lane.b32.xlu0 %v274, 127
  %v292 = vpop.permute.xlu0 %291
  %v293 = vld [vmem:[%s1 + $0x14] sm:$0x1]
  %v294 = vperm.slane %v293, 0
  %v295 = vmul.f32 %v290, %v294
  %v296 = vmul.f32 %v292, %v294
  %v297 = vadd.f32 %v287, %v295
  %v298 = vadd.f32 %v288, %v296
  %299 = vrot.lane.b32.xlu0 %v267, 1
  %v300 = vpop.permute.xlu0 %299
  %301 = vrot.lane.b32.xlu0 %v268, 1
  %v302 = vpop.permute.xlu0 %301
  %v303 = vld [vmem:[%s1 + $0x15] sm:$0x1]
  %v304 = vperm.slane %v303, 0
  %v305 = vmul.f32 %v300, %v304
  %v306 = vmul.f32 %v302, %v304
  %v307 = vadd.f32 %v297, %v305
  %v308 = vadd.f32 %v298, %v306
  %v309 = vld [vmem:[%s1 + $0x16] sm:$0x1]
  %v310 = vperm.slane %v309, 0
  %v311 = vmul.f32 %v267, %v310
  %v312 = vmul.f32 %v268, %v310
  %v313 = vadd.f32 %v307, %v311
  %v314 = vadd.f32 %v308, %v312
  %315 = vrot.lane.b32.xlu0 %v267, 127
  %v316 = vpop.permute.xlu0 %315
  %317 = vrot.lane.b32.xlu0 %v268, 127
  %v318 = vpop.permute.xlu0 %317
  %v319 = vld [vmem:[%s1 + $0x17] sm:$0x1]
  %v320 = vperm.slane %v319, 0
  %v321 = vmul.f32 %v316, %v320
  %v322 = vmul.f32 %v318, %v320
  %v323 = vadd.f32 %v313, %v321
  %v324 = vadd.f32 %v314, %v322
  %v325 = vrot.slane %v267, 1
  %v326 = vrot.slane %v268, 1
  %v327 = vsel %vm124, %v325, %v326
  %v328 = vsel %vm124, %v326, %v325
  %v329 = vsel %vm131, 0.0, %v327
  %v330 = vsel %vm132, 0.0, %v328
  %331 = vrot.lane.b32.xlu0 %v329, 1
  %v332 = vpop.permute.xlu0 %331
  %333 = vrot.lane.b32.xlu0 %v330, 1
  %v334 = vpop.permute.xlu0 %333
  %v335 = vld [vmem:[%s1 + $0x18] sm:$0x1]
  %v336 = vperm.slane %v335, 0
  %v337 = vmul.f32 %v332, %v336
  %v338 = vmul.f32 %v334, %v336
  %v339 = vadd.f32 %v323, %v337
  %v340 = vadd.f32 %v324, %v338
  %v341 = vld [vmem:[%s1 + $0x19] sm:$0x1]
  %v342 = vperm.slane %v341, 0
  %v343 = vmul.f32 %v329, %v342
  %v344 = vmul.f32 %v330, %v342
  %v345 = vadd.f32 %v339, %v343
  %v346 = vadd.f32 %v340, %v344
  %347 = vrot.lane.b32.xlu0 %v329, 127
  %v348 = vpop.permute.xlu0 %347
  %349 = vrot.lane.b32.xlu0 %v330, 127
  %v350 = vpop.permute.xlu0 %349
  %v351 = vld [vmem:[%s1 + $0x1a] sm:$0x1]
  %v352 = vperm.slane %v351, 0
  %v353 = vmul.f32 %v348, %v352
  %v354 = vmul.f32 %v350, %v352
  %v355 = vadd.f32 %v345, %v353
  %v356 = vadd.f32 %v346, %v354
  %357 = vrot.lane.b32.xlu0 %v40, 80
  %v358 = vpop.permute.xlu0 %357
  %359 = vrot.lane.b32.xlu0 %v41, 80
  %v360 = vpop.permute.xlu0 %359
  %v361 = vsel %vm30, %v162, %v40
  %v362 = vsel %vm30, %v164, %v41
  %v363 = vsel %vm27, %v260, %v361
  %v364 = vsel %vm27, %v262, %v362
  %v365 = vsel %vm24, %v358, %v363
  %v366 = vsel %vm24, %v360, %v364
  %v367 = vrot.slane %v365, 7
  %v368 = vrot.slane %v366, 7
  %v369 = vsel %vm62, %v367, %v368
  %v370 = vsel %vm62, %v368, %v367
  %v371 = vsel %vm68, 0.0, %v370
  %v372 = vsel %vm69, 0.0, %v369
  %373 = vrot.lane.b32.xlu0 %v371, 1
  %v374 = vpop.permute.xlu0 %373
  %375 = vrot.lane.b32.xlu0 %v372, 1
  %v376 = vpop.permute.xlu0 %375
  %v377 = vld [vmem:[%s1 + $0x1b] sm:$0x1]
  %v378 = vperm.slane %v377, 0
  %v379 = vmul.f32 %v374, %v378
  %v380 = vmul.f32 %v376, %v378
  %v381 = vld [vmem:[%s1 + $0x1c] sm:$0x1]
  %v382 = vperm.slane %v381, 0
  %v383 = vmul.f32 %v371, %v382
  %v384 = vmul.f32 %v372, %v382
  %v385 = vadd.f32 %v379, %v383
  %v386 = vadd.f32 %v380, %v384
  %387 = vrot.lane.b32.xlu0 %v371, 127
  %v388 = vpop.permute.xlu0 %387
  %389 = vrot.lane.b32.xlu0 %v372, 127
  %v390 = vpop.permute.xlu0 %389
  %v391 = vld [vmem:[%s1 + $0x1d] sm:$0x1]
  %v392 = vperm.slane %v391, 0
  %v393 = vmul.f32 %v388, %v392
  %v394 = vmul.f32 %v390, %v392
  %v395 = vadd.f32 %v385, %v393
  %v396 = vadd.f32 %v386, %v394
  %397 = vrot.lane.b32.xlu0 %v365, 1
  %v398 = vpop.permute.xlu0 %397
  %399 = vrot.lane.b32.xlu0 %v366, 1
  %v400 = vpop.permute.xlu0 %399
  %v401 = vld [vmem:[%s1 + $0x1e] sm:$0x1]
  %v402 = vperm.slane %v401, 0
  %v403 = vmul.f32 %v398, %v402
  %v404 = vmul.f32 %v400, %v402
  %v405 = vadd.f32 %v395, %v403
  %v406 = vadd.f32 %v396, %v404
  %v407 = vld [vmem:[%s1 + $0x1f] sm:$0x1]
  %v408 = vperm.slane %v407, 0
  %v409 = vmul.f32 %v365, %v408
  %v410 = vmul.f32 %v366, %v408
  %v411 = vadd.f32 %v405, %v409
  %v412 = vadd.f32 %v406, %v410
  %413 = vrot.lane.b32.xlu0 %v365, 127
  %v414 = vpop.permute.xlu0 %413
  %415 = vrot.lane.b32.xlu0 %v366, 127
  %v416 = vpop.permute.xlu0 %415
  %v417 = vld [vmem:[%s1 + $0x20] sm:$0x1]
  %v418 = vperm.slane %v417, 0
  %v419 = vmul.f32 %v414, %v418
  %v420 = vmul.f32 %v416, %v418
  %v421 = vadd.f32 %v411, %v419
  %v422 = vadd.f32 %v412, %v420
  %v423 = vrot.slane %v365, 1
  %v424 = vrot.slane %v366, 1
  %v425 = vsel %vm124, %v423, %v424
  %v426 = vsel %vm124, %v424, %v423
  %v427 = vsel %vm131, 0.0, %v425
  %v428 = vsel %vm132, 0.0, %v426
  %429 = vrot.lane.b32.xlu0 %v427, 1
  %v430 = vpop.permute.xlu0 %429
  %431 = vrot.lane.b32.xlu0 %v428, 1
  %v432 = vpop.permute.xlu0 %431
  %v433 = vld [vmem:[%s1 + $0x21] sm:$0x1]
  %v434 = vperm.slane %v433, 0
  %v435 = vmul.f32 %v430, %v434
  %v436 = vmul.f32 %v432, %v434
  %v437 = vadd.f32 %v421, %v435
  %v438 = vadd.f32 %v422, %v436
  %v439 = vld [vmem:[%s1 + $0x22] sm:$0x1]
  %v440 = vperm.slane %v439, 0
  %v441 = vmul.f32 %v427, %v440
  %v442 = vmul.f32 %v428, %v440
  %v443 = vadd.f32 %v437, %v441
  %v444 = vadd.f32 %v438, %v442
  %445 = vrot.lane.b32.xlu0 %v427, 127
  %v446 = vpop.permute.xlu0 %445
  %447 = vrot.lane.b32.xlu0 %v428, 127
  %v448 = vpop.permute.xlu0 %447
  %v449 = vld [vmem:[%s1 + $0x23] sm:$0x1]
  %v450 = vperm.slane %v449, 0
  %v451 = vmul.f32 %v446, %v450
  %v452 = vmul.f32 %v448, %v450
  %v453 = vadd.f32 %v443, %v451
  %v454 = vadd.f32 %v444, %v452
  %v455 = vadd.f32 %v159, %v257
  %v456 = vadd.f32 %v160, %v258
  %v457 = vadd.f32 %v355, %v453
  %v458 = vadd.f32 %v356, %v454
  %v459 = vadd.f32 %v455, %v457
  %v460 = vadd.f32 %v456, %v458
  %v461 = vperm.slane %v34, 0
  %v462 = vadd.f32 %v459, %v461
  %v463 = vadd.f32 %v460, %v461
  %v464 = vadd.f32 %v462, %v463
  %v465 = vrot.slane %v464, 4
  %v466 = vadd.f32 %v464, %v465
  %v467 = vrot.slane %v466, 2
  %v468 = vadd.f32 %v466, %v467
  %v469 = vrot.slane %v468, 1
  %v470 = vadd.f32 %v468, %v469
  %v471 = vmul.f32 %v462, %v462
  %v472 = vmul.f32 %v463, %v463
  %v473 = vadd.f32 %v471, %v472
  %v474 = vrot.slane %v473, 4
  %v475 = vadd.f32 %v473, %v474
  %v476 = vrot.slane %v475, 2
  %v477 = vadd.f32 %v475, %v476
  %v478 = vrot.slane %v477, 1
  %v479 = vadd.f32 %v477, %v478
  %v480 = vsel %vm15, %v470, 0.0
  %vm481 = vcmask 1040384
  %v482 = vsel %vm481, %v480, 0.0
  %483 = vadd.xlane.f32.xlu0 %v482
  %v484 = vpop.xlane.xlu0 %483
  %v485 = vmul.f32 %v484, 0.001953125
  %v486 = vsel %vm15, %v479, 0.0
  %v487 = vsel %vm481, %v486, 0.0
  %488 = vadd.xlane.f32.xlu0 %v487
  %v489 = vpop.xlane.xlu0 %488
  %v490 = vmul.f32 %v489, 0.001953125
  %v491 = vsel %vm15, %v485, 0.0
  %v492 = vsel %vm15, %v490, 0.0
  %v493 = vsel %vm17, %v470, 0.0
  %v494 = vsel %vm481, %v493, 0.0
  %495 = vadd.xlane.f32.xlu0 %v494
  %v496 = vpop.xlane.xlu0 %495
  %v497 = vmul.f32 %v496, 0.001953125
  %v498 = vsel %vm17, %v479, 0.0
  %v499 = vsel %vm481, %v498, 0.0
  %500 = vadd.xlane.f32.xlu0 %v499
  %v501 = vpop.xlane.xlu0 %500
  %v502 = vmul.f32 %v501, 0.001953125
  %v503 = vsel %vm17, %v497, %v491
  %v504 = vsel %vm17, %v502, %v492
  %v505 = vsel %vm19, %v470, 0.0
  %v506 = vsel %vm481, %v505, 0.0
  %507 = vadd.xlane.f32.xlu0 %v506
  %v508 = vpop.xlane.xlu0 %507
  %v509 = vmul.f32 %v508, 0.001953125
  %v510 = vsel %vm19, %v479, 0.0
  %v511 = vsel %vm481, %v510, 0.0
  %512 = vadd.xlane.f32.xlu0 %v511
  %v513 = vpop.xlane.xlu0 %512
  %v514 = vmul.f32 %v513, 0.001953125
  %v515 = vsel %vm19, %v509, %v503
  %v516 = vsel %vm19, %v514, %v504
  %v517 = vsel %vm21, %v470, 0.0
  %v518 = vsel %vm481, %v517, 0.0
  %519 = vadd.xlane.f32.xlu0 %v518
  %v520 = vpop.xlane.xlu0 %519
  %v521 = vmul.f32 %v520, 0.001953125
  %v522 = vsel %vm21, %v479, 0.0
  %v523 = vsel %vm481, %v522, 0.0
  %524 = vadd.xlane.f32.xlu0 %v523
  %v525 = vpop.xlane.xlu0 %524
  %v526 = vmul.f32 %v525, 0.001953125
  %v527 = vsel %vm21, %v521, %v515
  %v528 = vsel %vm21, %v526, %v516
  %v529 = vmul.f32 %v527, %v527
  %v530 = vsub.f32 %v528, %v529
  %v531 = vadd.f32 %v530, 1e-05
  %v532 = vrsqrt.pop %v531
  %v533 = vmul.f32 %v532, %v531
  %v534 = vmul.f32 %v533, %v532
  %v535 = vmul.f32 0.5, %v534
  %v536 = vsub.f32 1.5, %v535
  %v537 = vmul.f32 %v532, %v536
  %vm538 = vweird.f32 %v531
  %vm539 = vweird.f32 %v532
  %vm540 = vmor %vm538, %vm539
  %v541 = vsel %vm540, %v532, %v537
  %v542 = vmul.f32 %v541, %v36
  %v543 = vperm.slane %v527, 0
  %v544 = vsub.f32 %v462, %v543
  %v545 = vsub.f32 %v463, %v543
  %v546 = vperm.slane %v542, 0
  %v547 = vmul.f32 %v544, %v546
  %v548 = vmul.f32 %v545, %v546
  %v549 = vperm.slane %v37, 0
  %v550 = vadd.f32 %v547, %v549
  %v551 = vadd.f32 %v548, %v549
  %v552 = vmax.f32 %v550, 0.0
  %v553 = vmax.f32 %v551, 0.0
  %554 = vrot.lane.b32.xlu0 %v552, 16
  %v555 = vpop.permute.xlu0 %554
  %556 = vrot.lane.b32.xlu0 %v553, 16
  %v557 = vpop.permute.xlu0 %556
  %558 = vrot.lane.b32.xlu0 %v552, 32
  %v559 = vpop.permute.xlu0 %558
  %560 = vrot.lane.b32.xlu0 %v553, 32
  %v561 = vpop.permute.xlu0 %560
  %562 = vrot.lane.b32.xlu0 %v552, 48
  %v563 = vpop.permute.xlu0 %562
  %564 = vrot.lane.b32.xlu0 %v553, 48
  %v565 = vpop.permute.xlu0 %564
  %v566 = vsel %vm30, %v559, %v563
  %v567 = vsel %vm30, %v561, %v565
  %v568 = vsel %vm27, %v555, %v566
  %v569 = vsel %vm27, %v557, %v567
  %v570 = vsel %vm24, %v552, %v568
  %v571 = vsel %vm24, %v553, %v569
  %v572 = vrot.slane %v570, 7
  %v573 = vrot.slane %v571, 7
  %v574 = vsel %vm62, %v572, %v573
  %v575 = vsel %vm62, %v573, %v572
  %v576 = vsel %vm68, 0.0, %v575
  %v577 = vsel %vm69, 0.0, %v574
  %578 = vrot.lane.b32.xlu0 %v576, 1
  %v579 = vpop.permute.xlu0 %578
  %580 = vrot.lane.b32.xlu0 %v577, 1
  %v581 = vpop.permute.xlu0 %580
  %v582 = vld [vmem:[%s1 + $0x24] sm:$0x1]
  %v583 = vperm.slane %v582, 0
  %v584 = vmul.f32 %v579, %v583
  %v585 = vmul.f32 %v581, %v583
  %v586 = vld [vmem:[%s1 + $0x25] sm:$0x1]
  %v587 = vperm.slane %v586, 0
  %v588 = vmul.f32 %v576, %v587
  %v589 = vmul.f32 %v577, %v587
  %v590 = vadd.f32 %v584, %v588
  %v591 = vadd.f32 %v585, %v589
  %592 = vrot.lane.b32.xlu0 %v576, 127
  %v593 = vpop.permute.xlu0 %592
  %594 = vrot.lane.b32.xlu0 %v577, 127
  %v595 = vpop.permute.xlu0 %594
  %v596 = vld [vmem:[%s1 + $0x26] sm:$0x1]
  %v597 = vperm.slane %v596, 0
  %v598 = vmul.f32 %v593, %v597
  %v599 = vmul.f32 %v595, %v597
  %v600 = vadd.f32 %v590, %v598
  %v601 = vadd.f32 %v591, %v599
  %602 = vrot.lane.b32.xlu0 %v570, 1
  %v603 = vpop.permute.xlu0 %602
  %604 = vrot.lane.b32.xlu0 %v571, 1
  %v605 = vpop.permute.xlu0 %604
  %v606 = vld [vmem:[%s1 + $0x27] sm:$0x1]
  %v607 = vperm.slane %v606, 0
  %v608 = vmul.f32 %v603, %v607
  %v609 = vmul.f32 %v605, %v607
  %v610 = vadd.f32 %v600, %v608
  %v611 = vadd.f32 %v601, %v609
  %v612 = vld [vmem:[%s1 + $0x28] sm:$0x1]
  %v613 = vperm.slane %v612, 0
  %v614 = vmul.f32 %v570, %v613
  %v615 = vmul.f32 %v571, %v613
  %v616 = vadd.f32 %v610, %v614
  %v617 = vadd.f32 %v611, %v615
  %618 = vrot.lane.b32.xlu0 %v570, 127
  %v619 = vpop.permute.xlu0 %618
  %620 = vrot.lane.b32.xlu0 %v571, 127
  %v621 = vpop.permute.xlu0 %620
  %v622 = vld [vmem:[%s1 + $0x29] sm:$0x1]
  %v623 = vperm.slane %v622, 0
  %v624 = vmul.f32 %v619, %v623
  %v625 = vmul.f32 %v621, %v623
  %v626 = vadd.f32 %v616, %v624
  %v627 = vadd.f32 %v617, %v625
  %v628 = vrot.slane %v570, 1
  %v629 = vrot.slane %v571, 1
  %v630 = vsel %vm124, %v628, %v629
  %v631 = vsel %vm124, %v629, %v628
  %v632 = vsel %vm131, 0.0, %v630
  %v633 = vsel %vm132, 0.0, %v631
  %634 = vrot.lane.b32.xlu0 %v632, 1
  %v635 = vpop.permute.xlu0 %634
  %636 = vrot.lane.b32.xlu0 %v633, 1
  %v637 = vpop.permute.xlu0 %636
  %v638 = vld [vmem:[%s1 + $0x2a] sm:$0x1]
  %v639 = vperm.slane %v638, 0
  %v640 = vmul.f32 %v635, %v639
  %v641 = vmul.f32 %v637, %v639
  %v642 = vadd.f32 %v626, %v640
  %v643 = vadd.f32 %v627, %v641
  %v644 = vld [vmem:[%s1 + $0x2b] sm:$0x1]
  %v645 = vperm.slane %v644, 0
  %v646 = vmul.f32 %v632, %v645
  %v647 = vmul.f32 %v633, %v645
  %v648 = vadd.f32 %v642, %v646
  %v649 = vadd.f32 %v643, %v647
  %650 = vrot.lane.b32.xlu0 %v632, 127
  %v651 = vpop.permute.xlu0 %650
  %652 = vrot.lane.b32.xlu0 %v633, 127
  %v653 = vpop.permute.xlu0 %652
  %v654 = vld [vmem:[%s1 + $0x2c] sm:$0x1]
  %v655 = vperm.slane %v654, 0
  %v656 = vmul.f32 %v651, %v655
  %v657 = vmul.f32 %v653, %v655
  %v658 = vadd.f32 %v648, %v656
  %v659 = vadd.f32 %v649, %v657
  %660 = vrot.lane.b32.xlu0 %v552, 112
  %v661 = vpop.permute.xlu0 %660
  %662 = vrot.lane.b32.xlu0 %v553, 112
  %v663 = vpop.permute.xlu0 %662
  %v664 = vsel %vm30, %v555, %v559
  %v665 = vsel %vm30, %v557, %v561
  %v666 = vsel %vm27, %v552, %v664
  %v667 = vsel %vm27, %v553, %v665
  %v668 = vsel %vm24, %v661, %v666
  %v669 = vsel %vm24, %v663, %v667
  %v670 = vrot.slane %v668, 7
  %v671 = vrot.slane %v669, 7
  %v672 = vsel %vm62, %v670, %v671
  %v673 = vsel %vm62, %v671, %v670
  %v674 = vsel %vm68, 0.0, %v673
  %v675 = vsel %vm69, 0.0, %v672
  %676 = vrot.lane.b32.xlu0 %v674, 1
  %v677 = vpop.permute.xlu0 %676
  %678 = vrot.lane.b32.xlu0 %v675, 1
  %v679 = vpop.permute.xlu0 %678
  %v680 = vld [vmem:[%s1 + $0x2d] sm:$0x1]
  %v681 = vperm.slane %v680, 0
  %v682 = vmul.f32 %v677, %v681
  %v683 = vmul.f32 %v679, %v681
  %v684 = vld [vmem:[%s1 + $0x2e] sm:$0x1]
  %v685 = vperm.slane %v684, 0
  %v686 = vmul.f32 %v674, %v685
  %v687 = vmul.f32 %v675, %v685
  %v688 = vadd.f32 %v682, %v686
  %v689 = vadd.f32 %v683, %v687
  %690 = vrot.lane.b32.xlu0 %v674, 127
  %v691 = vpop.permute.xlu0 %690
  %692 = vrot.lane.b32.xlu0 %v675, 127
  %v693 = vpop.permute.xlu0 %692
  %v694 = vld [vmem:[%s1 + $0x2f] sm:$0x1]
  %v695 = vperm.slane %v694, 0
  %v696 = vmul.f32 %v691, %v695
  %v697 = vmul.f32 %v693, %v695
  %v698 = vadd.f32 %v688, %v696
  %v699 = vadd.f32 %v689, %v697
  %700 = vrot.lane.b32.xlu0 %v668, 1
  %v701 = vpop.permute.xlu0 %700
  %702 = vrot.lane.b32.xlu0 %v669, 1
  %v703 = vpop.permute.xlu0 %702
  %v704 = vld [vmem:[%s1 + $0x30] sm:$0x1]
  %v705 = vperm.slane %v704, 0
  %v706 = vmul.f32 %v701, %v705
  %v707 = vmul.f32 %v703, %v705
  %v708 = vadd.f32 %v698, %v706
  %v709 = vadd.f32 %v699, %v707
  %v710 = vld [vmem:[%s1 + $0x31] sm:$0x1]
  %v711 = vperm.slane %v710, 0
  %v712 = vmul.f32 %v668, %v711
  %v713 = vmul.f32 %v669, %v711
  %v714 = vadd.f32 %v708, %v712
  %v715 = vadd.f32 %v709, %v713
  %716 = vrot.lane.b32.xlu0 %v668, 127
  %v717 = vpop.permute.xlu0 %716
  %718 = vrot.lane.b32.xlu0 %v669, 127
  %v719 = vpop.permute.xlu0 %718
  %v720 = vld [vmem:[%s1 + $0x32] sm:$0x1]
  %v721 = vperm.slane %v720, 0
  %v722 = vmul.f32 %v717, %v721
  %v723 = vmul.f32 %v719, %v721
  %v724 = vadd.f32 %v714, %v722
  %v725 = vadd.f32 %v715, %v723
  %v726 = vrot.slane %v668, 1
  %v727 = vrot.slane %v669, 1
  %v728 = vsel %vm124, %v726, %v727
  %v729 = vsel %vm124, %v727, %v726
  %v730 = vsel %vm131, 0.0, %v728
  %v731 = vsel %vm132, 0.0, %v729
  %732 = vrot.lane.b32.xlu0 %v730, 1
  %v733 = vpop.permute.xlu0 %732
  %734 = vrot.lane.b32.xlu0 %v731, 1
  %v735 = vpop.permute.xlu0 %734
  %v736 = vld [vmem:[%s1 + $0x33] sm:$0x1]
  %v737 = vperm.slane %v736, 0
  %v738 = vmul.f32 %v733, %v737
  %v739 = vmul.f32 %v735, %v737
  %v740 = vadd.f32 %v724, %v738
  %v741 = vadd.f32 %v725, %v739
  %v742 = vld [vmem:[%s1 + $0x34] sm:$0x1]
  %v743 = vperm.slane %v742, 0
  %v744 = vmul.f32 %v730, %v743
  %v745 = vmul.f32 %v731, %v743
  %v746 = vadd.f32 %v740, %v744
  %v747 = vadd.f32 %v741, %v745
  %748 = vrot.lane.b32.xlu0 %v730, 127
  %v749 = vpop.permute.xlu0 %748
  %750 = vrot.lane.b32.xlu0 %v731, 127
  %v751 = vpop.permute.xlu0 %750
  %v752 = vld [vmem:[%s1 + $0x35] sm:$0x1]
  %v753 = vperm.slane %v752, 0
  %v754 = vmul.f32 %v749, %v753
  %v755 = vmul.f32 %v751, %v753
  %v756 = vadd.f32 %v746, %v754
  %v757 = vadd.f32 %v747, %v755
  %758 = vrot.lane.b32.xlu0 %v552, 96
  %v759 = vpop.permute.xlu0 %758
  %760 = vrot.lane.b32.xlu0 %v553, 96
  %v761 = vpop.permute.xlu0 %760
  %v762 = vsel %vm30, %v552, %v555
  %v763 = vsel %vm30, %v553, %v557
  %v764 = vsel %vm27, %v661, %v762
  %v765 = vsel %vm27, %v663, %v763
  %v766 = vsel %vm24, %v759, %v764
  %v767 = vsel %vm24, %v761, %v765
  %v768 = vrot.slane %v766, 7
  %v769 = vrot.slane %v767, 7
  %v770 = vsel %vm62, %v768, %v769
  %v771 = vsel %vm62, %v769, %v768
  %v772 = vsel %vm68, 0.0, %v771
  %v773 = vsel %vm69, 0.0, %v770
  %774 = vrot.lane.b32.xlu0 %v772, 1
  %v775 = vpop.permute.xlu0 %774
  %776 = vrot.lane.b32.xlu0 %v773, 1
  %v777 = vpop.permute.xlu0 %776
  %v778 = vld [vmem:[%s1 + $0x36] sm:$0x1]
  %v779 = vperm.slane %v778, 0
  %v780 = vmul.f32 %v775, %v779
  %v781 = vmul.f32 %v777, %v779
  %v782 = vld [vmem:[%s1 + $0x37] sm:$0x1]
  %v783 = vperm.slane %v782, 0
  %v784 = vmul.f32 %v772, %v783
  %v785 = vmul.f32 %v773, %v783
  %v786 = vadd.f32 %v780, %v784
  %v787 = vadd.f32 %v781, %v785
  %788 = vrot.lane.b32.xlu0 %v772, 127
  %v789 = vpop.permute.xlu0 %788
  %790 = vrot.lane.b32.xlu0 %v773, 127
  %v791 = vpop.permute.xlu0 %790
  %v792 = vld [vmem:[%s1 + $0x38] sm:$0x1]
  %v793 = vperm.slane %v792, 0
  %v794 = vmul.f32 %v789, %v793
  %v795 = vmul.f32 %v791, %v793
  %v796 = vadd.f32 %v786, %v794
  %v797 = vadd.f32 %v787, %v795
  %798 = vrot.lane.b32.xlu0 %v766, 1
  %v799 = vpop.permute.xlu0 %798
  %800 = vrot.lane.b32.xlu0 %v767, 1
  %v801 = vpop.permute.xlu0 %800
  %v802 = vld [vmem:[%s1 + $0x39] sm:$0x1]
  %v803 = vperm.slane %v802, 0
  %v804 = vmul.f32 %v799, %v803
  %v805 = vmul.f32 %v801, %v803
  %v806 = vadd.f32 %v796, %v804
  %v807 = vadd.f32 %v797, %v805
  %v808 = vld [vmem:[%s1 + $0x3a] sm:$0x1]
  %v809 = vperm.slane %v808, 0
  %v810 = vmul.f32 %v766, %v809
  %v811 = vmul.f32 %v767, %v809
  %v812 = vadd.f32 %v806, %v810
  %v813 = vadd.f32 %v807, %v811
  %814 = vrot.lane.b32.xlu0 %v766, 127
  %v815 = vpop.permute.xlu0 %814
  %816 = vrot.lane.b32.xlu0 %v767, 127
  %v817 = vpop.permute.xlu0 %816
  %v818 = vld [vmem:[%s1 + $0x3b] sm:$0x1]
  %v819 = vperm.slane %v818, 0
  %v820 = vmul.f32 %v815, %v819
  %v821 = vmul.f32 %v817, %v819
  %v822 = vadd.f32 %v812, %v820
  %v823 = vadd.f32 %v813, %v821
  %v824 = vrot.slane %v766, 1
  %v825 = vrot.slane %v767, 1
  %v826 = vsel %vm124, %v824, %v825
  %v827 = vsel %vm124, %v825, %v824
  %v828 = vsel %vm131, 0.0, %v826
  %v829 = vsel %vm132, 0.0, %v827
  %830 = vrot.lane.b32.xlu0 %v828, 1
  %v831 = vpop.permute.xlu0 %830
  %832 = vrot.lane.b32.xlu0 %v829, 1
  %v833 = vpop.permute.xlu0 %832
  %v834 = vld [vmem:[%s1 + $0x3c] sm:$0x1]
  %v835 = vperm.slane %v834, 0
  %v836 = vmul.f32 %v831, %v835
  %v837 = vmul.f32 %v833, %v835
  %v838 = vadd.f32 %v822, %v836
  %v839 = vadd.f32 %v823, %v837
  %v840 = vld [vmem:[%s1 + $0x3d] sm:$0x1]
  %v841 = vperm.slane %v840, 0
  %v842 = vmul.f32 %v828, %v841
  %v843 = vmul.f32 %v829, %v841
  %v844 = vadd.f32 %v838, %v842
  %v845 = vadd.f32 %v839, %v843
  %846 = vrot.lane.b32.xlu0 %v828, 127
  %v847 = vpop.permute.xlu0 %846
  %848 = vrot.lane.b32.xlu0 %v829, 127
  %v849 = vpop.permute.xlu0 %848
  %v850 = vld [vmem:[%s1 + $0x3e] sm:$0x1]
  %v851 = vperm.slane %v850, 0
  %v852 = vmul.f32 %v847, %v851
  %v853 = vmul.f32 %v849, %v851
  %v854 = vadd.f32 %v844, %v852
  %v855 = vadd.f32 %v845, %v853
  %856 = vrot.lane.b32.xlu0 %v552, 80
  %v857 = vpop.permute.xlu0 %856
  %858 = vrot.lane.b32.xlu0 %v553, 80
  %v859 = vpop.permute.xlu0 %858
  %v860 = vsel %vm30, %v661, %v552
  %v861 = vsel %vm30, %v663, %v553
  %v862 = vsel %vm27, %v759, %v860
  %v863 = vsel %vm27, %v761, %v861
  %v864 = vsel %vm24, %v857, %v862
  %v865 = vsel %vm24, %v859, %v863
  %v866 = vrot.slane %v864, 7
  %v867 = vrot.slane %v865, 7
  %v868 = vsel %vm62, %v866, %v867
  %v869 = vsel %vm62, %v867, %v866
  %v870 = vsel %vm68, 0.0, %v869
  %v871 = vsel %vm69, 0.0, %v868
  %872 = vrot.lane.b32.xlu0 %v870, 1
  %v873 = vpop.permute.xlu0 %872
  %874 = vrot.lane.b32.xlu0 %v871, 1
  %v875 = vpop.permute.xlu0 %874
  %v876 = vld [vmem:[%s1 + $0x3f] sm:$0x1]
  %v877 = vperm.slane %v876, 0
  %v878 = vmul.f32 %v873, %v877
  %v879 = vmul.f32 %v875, %v877
  %v880 = vld [vmem:[%s1 + $0x40] sm:$0x1]
  %v881 = vperm.slane %v880, 0
  %v882 = vmul.f32 %v870, %v881
  %v883 = vmul.f32 %v871, %v881
  %v884 = vadd.f32 %v878, %v882
  %v885 = vadd.f32 %v879, %v883
  %886 = vrot.lane.b32.xlu0 %v870, 127
  %v887 = vpop.permute.xlu0 %886
  %888 = vrot.lane.b32.xlu0 %v871, 127
  %v889 = vpop.permute.xlu0 %888
  %v890 = vld [vmem:[%s1 + $0x41] sm:$0x1]
  %v891 = vperm.slane %v890, 0
  %v892 = vmul.f32 %v887, %v891
  %v893 = vmul.f32 %v889, %v891
  %v894 = vadd.f32 %v884, %v892
  %v895 = vadd.f32 %v885, %v893
  %896 = vrot.lane.b32.xlu0 %v864, 1
  %v897 = vpop.permute.xlu0 %896
  %898 = vrot.lane.b32.xlu0 %v865, 1
  %v899 = vpop.permute.xlu0 %898
  %v900 = vld [vmem:[%s1 + $0x42] sm:$0x1]
  %v901 = vperm.slane %v900, 0
  %v902 = vmul.f32 %v897, %v901
  %v903 = vmul.f32 %v899, %v901
  %v904 = vadd.f32 %v894, %v902
  %v905 = vadd.f32 %v895, %v903
  %v906 = vld [vmem:[%s1 + $0x43] sm:$0x1]
  %v907 = vperm.slane %v906, 0
  %v908 = vmul.f32 %v864, %v907
  %v909 = vmul.f32 %v865, %v907
  %v910 = vadd.f32 %v904, %v908
  %v911 = vadd.f32 %v905, %v909
  %912 = vrot.lane.b32.xlu0 %v864, 127
  %v913 = vpop.permute.xlu0 %912
  %914 = vrot.lane.b32.xlu0 %v865, 127
  %v915 = vpop.permute.xlu0 %914
  %v916 = vld [vmem:[%s1 + $0x44] sm:$0x1]
  %v917 = vperm.slane %v916, 0
  %v918 = vmul.f32 %v913, %v917
  %v919 = vmul.f32 %v915, %v917
  %v920 = vadd.f32 %v910, %v918
  %v921 = vadd.f32 %v911, %v919
  %v922 = vrot.slane %v864, 1
  %v923 = vrot.slane %v865, 1
  %v924 = vsel %vm124, %v922, %v923
  %v925 = vsel %vm124, %v923, %v922
  %v926 = vsel %vm131, 0.0, %v924
  %v927 = vsel %vm132, 0.0, %v925
  %928 = vrot.lane.b32.xlu0 %v926, 1
  %v929 = vpop.permute.xlu0 %928
  %930 = vrot.lane.b32.xlu0 %v927, 1
  %v931 = vpop.permute.xlu0 %930
  %v932 = vld [vmem:[%s1 + $0x45] sm:$0x1]
  %v933 = vperm.slane %v932, 0
  %v934 = vmul.f32 %v929, %v933
  %v935 = vmul.f32 %v931, %v933
  %v936 = vadd.f32 %v920, %v934
  %v937 = vadd.f32 %v921, %v935
  %v938 = vld [vmem:[%s1 + $0x46] sm:$0x1]
  %v939 = vperm.slane %v938, 0
  %v940 = vmul.f32 %v926, %v939
  %v941 = vmul.f32 %v927, %v939
  %v942 = vadd.f32 %v936, %v940
  %v943 = vadd.f32 %v937, %v941
  %944 = vrot.lane.b32.xlu0 %v926, 127
  %v945 = vpop.permute.xlu0 %944
  %946 = vrot.lane.b32.xlu0 %v927, 127
  %v947 = vpop.permute.xlu0 %946
  %v948 = vld [vmem:[%s1 + $0x47] sm:$0x1]
  %v949 = vperm.slane %v948, 0
  %v950 = vmul.f32 %v945, %v949
  %v951 = vmul.f32 %v947, %v949
  %v952 = vadd.f32 %v942, %v950
  %v953 = vadd.f32 %v943, %v951
  %v954 = vadd.f32 %v658, %v756
  %v955 = vadd.f32 %v659, %v757
  %v956 = vadd.f32 %v854, %v952
  %v957 = vadd.f32 %v855, %v953
  %v958 = vadd.f32 %v954, %v956
  %v959 = vadd.f32 %v955, %v957
  %v960 = vperm.slane %v35, 0
  %v961 = vadd.f32 %v958, %v960
  %v962 = vadd.f32 %v959, %v960
  %v963 = vadd.f32 %v961, %v962
  %v964 = vrot.slane %v963, 4
  %v965 = vadd.f32 %v963, %v964
  %v966 = vrot.slane %v965, 2
  %v967 = vadd.f32 %v965, %v966
  %v968 = vrot.slane %v967, 1
  %v969 = vadd.f32 %v967, %v968
  %v970 = vmul.f32 %v961, %v961
  %v971 = vmul.f32 %v962, %v962
  %v972 = vadd.f32 %v970, %v971
  %v973 = vrot.slane %v972, 4
  %v974 = vadd.f32 %v972, %v973
  %v975 = vrot.slane %v974, 2
  %v976 = vadd.f32 %v974, %v975
  %v977 = vrot.slane %v976, 1
  %v978 = vadd.f32 %v976, %v977
  %v979 = vsel %vm15, %v969, 0.0
  %v980 = vsel %vm481, %v979, 0.0
  %981 = vadd.xlane.f32.xlu0 %v980
  %v982 = vpop.xlane.xlu0 %981
  %v983 = vmul.f32 %v982, 0.001953125
  %v984 = vsel %vm15, %v978, 0.0
  %v985 = vsel %vm481, %v984, 0.0
  %986 = vadd.xlane.f32.xlu0 %v985
  %v987 = vpop.xlane.xlu0 %986
  %v988 = vmul.f32 %v987, 0.001953125
  %v989 = vsel %vm15, %v983, 0.0
  %v990 = vsel %vm15, %v988, 0.0
  %v991 = vsel %vm17, %v969, 0.0
  %v992 = vsel %vm481, %v991, 0.0
  %993 = vadd.xlane.f32.xlu0 %v992
  %v994 = vpop.xlane.xlu0 %993
  %v995 = vmul.f32 %v994, 0.001953125
  %v996 = vsel %vm17, %v978, 0.0
  %v997 = vsel %vm481, %v996, 0.0
  %998 = vadd.xlane.f32.xlu0 %v997
  %v999 = vpop.xlane.xlu0 %998
  %v1000 = vmul.f32 %v999, 0.001953125
  %v1001 = vsel %vm17, %v995, %v989
  %v1002 = vsel %vm17, %v1000, %v990
  %v1003 = vsel %vm19, %v969, 0.0
  %v1004 = vsel %vm481, %v1003, 0.0
  %1005 = vadd.xlane.f32.xlu0 %v1004
  %v1006 = vpop.xlane.xlu0 %1005
  %v1007 = vmul.f32 %v1006, 0.001953125
  %v1008 = vsel %vm19, %v978, 0.0
  %v1009 = vsel %vm481, %v1008, 0.0
  %1010 = vadd.xlane.f32.xlu0 %v1009
  %v1011 = vpop.xlane.xlu0 %1010
  %v1012 = vmul.f32 %v1011, 0.001953125
  %v1013 = vsel %vm19, %v1007, %v1001
  %v1014 = vsel %vm19, %v1012, %v1002
  %v1015 = vsel %vm21, %v969, 0.0
  %v1016 = vsel %vm481, %v1015, 0.0
  %1017 = vadd.xlane.f32.xlu0 %v1016
  %v1018 = vpop.xlane.xlu0 %1017
  %v1019 = vmul.f32 %v1018, 0.001953125
  %v1020 = vsel %vm21, %v978, 0.0
  %v1021 = vsel %vm481, %v1020, 0.0
  %1022 = vadd.xlane.f32.xlu0 %v1021
  %v1023 = vpop.xlane.xlu0 %1022
  %v1024 = vmul.f32 %v1023, 0.001953125
  %v1025 = vsel %vm21, %v1019, %v1013
  %v1026 = vsel %vm21, %v1024, %v1014
  %v1027 = vmul.f32 %v1025, %v1025
  %v1028 = vsub.f32 %v1026, %v1027
  %v1029 = vadd.f32 %v1028, 1e-05
  %v1030 = vrsqrt.pop %v1029
  %v1031 = vmul.f32 %v1030, %v1029
  %v1032 = vmul.f32 %v1031, %v1030
  %v1033 = vmul.f32 0.5, %v1032
  %v1034 = vsub.f32 1.5, %v1033
  %v1035 = vmul.f32 %v1030, %v1034
  %vm1036 = vweird.f32 %v1029
  %vm1037 = vweird.f32 %v1030
  %vm1038 = vmor %vm1036, %vm1037
  %v1039 = vsel %vm1038, %v1030, %v1035
  %v1040 = vmul.f32 %v1039, %v38
  %v1041 = vperm.slane %v1025, 0
  %v1042 = vsub.f32 %v961, %v1041
  %v1043 = vsub.f32 %v962, %v1041
  %v1044 = vperm.slane %v1040, 0
  %v1045 = vmul.f32 %v1042, %v1044
  %v1046 = vmul.f32 %v1043, %v1044
  %v1047 = vperm.slane %v39, 0
  %v1048 = vadd.f32 %v1045, %v1047
  %v1049 = vadd.f32 %v1046, %v1047
  %v1050 = vadd.f32 %v40, %v1048
  %v1051 = vadd.f32 %v41, %v1049
  %v1052 = vmax.f32 %v1050, 0.0
  %v1053 = vmax.f32 %v1051, 0.0
  %1054 = vst [vmem:[%s3] sm:$0xff] %v1052
  %1055 = vst [vmem:[%s3 + $0x8] sm:$0xff] %v1053
  // Predicated region
  $region14: #{resblock_forward.1} parent=0 // pred_check
    _
  $region15: #{resblock_forward.1} parent=0 // pred_check_branch
    %1057 = sbr.rel (0) target = $region17
  $region16: #{resblock_forward.1} parent=0 // pred_region
    _
  $region17: #{resblock_forward.1} parent=0 // pred_fallthru
    _
  // Predicated region
  $region18: #{resblock_forward.1} parent=0 // pred_check
    _
  $region19: #{resblock_forward.1} parent=0 // pred_check_branch
    %1059 = sbr.rel (0) target = $region21
  $region20: #{resblock_forward.1} parent=0 // pred_region
    _
  $region21: #{resblock_forward.1} parent=0 // pred_fallthru
    _

</llo_original>
